<compile_context>
chip_gen: v6e
topology: v6e:2x2x1
jax: 0.10.0
libtpu: 0.0.40
codegen_flags: <defaults>
</compile_context>

<pallas_src>
import functools

import jax
import jax.numpy as jnp
import numpy as np
from jax import lax
from jax.experimental import pallas as pl
from jax.experimental.pallas import tpu as pltpu


def _attention_kernel(x_ref, wq_ref, wk_ref, wv_ref, wproj_ref, bproj_ref, o_ref,
                      *, num_heads, head_dim, scale):
    # x_ref:     (1, N, C) f32
    # wq/wk/wv:  (H, C, D) bf16
    # wproj_ref: (H, D, C) bf16
    # bproj_ref: (1, C)    f32
    H = num_heads
    x = x_ref[0]                                           # (N, C) f32
    N, C = x.shape

    # Broadcast activations over heads once; all projections become one
    # head-batched MXU dot_general each (no lane slicing, no transposes).
    xb = jnp.broadcast_to(x.astype(jnp.bfloat16)[None], (H, N, C))   # (H, N, C)

    dn_xw = (((2,), (1,)), ((0,), (0,)))   # (H,N,C) x (H,C,D) -> (H,N,D)
    q = lax.dot_general(xb, wq_ref[...], dn_xw, preferred_element_type=jnp.float32)
    k = lax.dot_general(xb, wk_ref[...], dn_xw, preferred_element_type=jnp.float32)
    v = lax.dot_general(xb, wv_ref[...], dn_xw, preferred_element_type=jnp.float32)

    # Scale applied once to the whole q tile (f32), then cast to bf16 MXU operands.
    qb = (q * scale).astype(jnp.bfloat16)                  # (H, N, D)
    kb = k.astype(jnp.bfloat16)
    vb = v.astype(jnp.bfloat16)

    # Scores for all heads in one batched dot_general: (H,N,D) x (H,N,D) -> (H,N,N).
    dn_qk = (((2,), (2,)), ((0,), (0,)))
    s = lax.dot_general(qb, kb, dn_qk, preferred_element_type=jnp.float32)

    # Softmax in f32 (max-subtracted); EUP approx reciprocal for the denominator.
    s = s - jnp.max(s, axis=-1, keepdims=True)
    p = jnp.exp(s)
    p = p * pl.reciprocal(jnp.sum(p, axis=-1, keepdims=True), approx=True)

    # Context: (H,N,N) x (H,N,D) -> (H,N,D).
    dn_pv = (((2,), (1,)), ((0,), (0,)))
    ctx = lax.dot_general(p.astype(jnp.bfloat16), vb, dn_pv,
                          preferred_element_type=jnp.float32)

    # Output projection folded per head, reduced over heads (no concatenate):
    # (H,N,D) x (H,D,C) -> (H,N,C) -> sum over H -> (N,C).
    outh = lax.dot_general(ctx.astype(jnp.bfloat16), wproj_ref[...], dn_pv,
                           preferred_element_type=jnp.float32)
    out = jnp.sum(outh, axis=0) + bproj_ref[...]           # (N, C)

    o_ref[0] = out.astype(o_ref.dtype)


def attention_forward(x, wqkv, wproj, bproj, *, num_heads, head_dim, scale):
    """x: (B,N,C) f32; wqkv: (C, 3*H*D) [q|k|v, head-major]; wproj: (H*D, C); bproj: (1, C)."""
    B, N, C = x.shape
    H, D = num_heads, head_dim
    hd = H * D
    assert wqkv.shape == (C, 3 * hd) and wproj.shape == (hd, C)

    # Wrapper-side weight re-layout (layout plumbing only, done once):
    #   wqkv (C, 3*H*D) -> (3, H, C, D); wproj (H*D, C) -> (H, D, C); cast to bf16.
    w3 = wqkv.reshape(C, 3, H, D).transpose(1, 2, 0, 3).astype(jnp.bfloat16)
    wq, wk, wv = w3[0], w3[1], w3[2]                        # each (H, C, D)
    wp = wproj.reshape(H, D, C).astype(jnp.bfloat16)        # (H, D, C)

    kernel = functools.partial(_attention_kernel,
                               num_heads=H, head_dim=D, scale=scale)

    flops = 2 * B * N * (C * 3 * hd + 2 * H * N * D + hd * C)
    bytes_accessed = (B * N * C * 4                       # x
                      + (3 * C * hd + hd * C) * 2         # bf16 weights
                      + C * 4                             # bias
                      + B * N * C * 4)                    # output
    cost = pl.CostEstimate(flops=flops,
                           transcendentals=B * H * N * N,
                           bytes_accessed=bytes_accessed)

    return pl.pallas_call(
        kernel,
        out_shape=jax.ShapeDtypeStruct((B, N, C), x.dtype),
        grid_spec=pltpu.PrefetchScalarGridSpec(
            num_scalar_prefetch=0,
            grid=(B,),
            in_specs=[
                pl.BlockSpec((1, N, C), lambda b: (b, 0, 0)),
                pl.BlockSpec((H, C, D), lambda b: (0, 0, 0)),
                pl.BlockSpec((H, C, D), lambda b: (0, 0, 0)),
                pl.BlockSpec((H, C, D), lambda b: (0, 0, 0)),
                pl.BlockSpec((H, D, C), lambda b: (0, 0, 0)),
                pl.BlockSpec((1, C), lambda b: (0, 0)),
            ],
            out_specs=pl.BlockSpec((1, N, C), lambda b: (b, 0, 0)),
        ),
        compiler_params=pltpu.CompilerParams(
            dimension_semantics=("parallel",),
            vmem_limit_bytes=32 * 1024 * 1024),
        cost_estimate=cost,
    )(x, wq, wk, wv, wp, bproj)


def attention_reference(x, wqkv, wproj, bproj, *, num_heads, head_dim, scale):
    """Pure-JAX f32 reference mirroring the PyTorch forward."""
    B, N, C = x.shape
    qkv = x @ wqkv                                              # (B, N, 3*H*D)
    qkv = qkv.reshape(B, N, 3, num_heads, head_dim).transpose(2, 0, 3, 1, 4)
    q, k, v = qkv[0], qkv[1], qkv[2]                            # (B, H, N, D)
    q = q * scale
    attn = q @ jnp.swapaxes(k, -2, -1)                          # (B, H, N, N)
    attn = jax.nn.softmax(attn, axis=-1)
    out = (attn @ v).transpose(0, 2, 1, 3).reshape(B, N, -1)    # (B, N, H*D)
    return out @ wproj + bproj[0]


if __name__ == "__main__":
    # Module hyper-parameters (small, consistent with Attention(dim, num_heads=8)).
    B, N, dim = 2, 8, 32
    num_heads = 8
    head_dim = dim // num_heads
    all_head_dim = head_dim * num_heads
    scale = head_dim ** (-0.5)

    key = jax.random.PRNGKey(0)
    kx, kqkv, kproj_w, kproj_b = jax.random.split(key, 4)

    x = jax.random.normal(kx, (B, N, dim), dtype=jnp.float32)

    # nn.Linear(dim, 3*all_head_dim, bias=False): weight (3*HD, dim) -> stored transposed.
    wqkv = jax.random.normal(kqkv, (dim, 3 * all_head_dim), dtype=jnp.float32) * 0.05
    # nn.Linear(all_head_dim, dim): weight (dim, HD) -> transposed, plus bias (dim,).
    wproj = jax.random.normal(kproj_w, (all_head_dim, dim), dtype=jnp.float32) * 0.05
    bproj = jax.random.normal(kproj_b, (1, dim), dtype=jnp.float32) * 0.05

    out = attention_forward(x, wqkv, wproj, bproj,
                            num_heads=num_heads, head_dim=head_dim, scale=scale)
    out = jax.block_until_ready(out)

    ref = attention_reference(x, wqkv, wproj, bproj,
                              num_heads=num_heads, head_dim=head_dim, scale=scale)
    # bf16 MXU operands + approx reciprocal -> relaxed tolerance vs the f32 reference.
    np.testing.assert_allclose(np.asarray(out), np.asarray(ref), atol=2e-2, rtol=2e-2)

    print("KERNEL_OK")
</pallas_src>

<mosaic_0001>
module attributes {stable_mosaic.version = 11 : i64} {
  func.func @_attention_kernel(%arg0: i32, %arg1: memref<1x8x32xf32, #tpu.memory_space<vmem>>, %arg2: memref<8x32x4xbf16, #tpu.memory_space<vmem>>, %arg3: memref<8x32x4xbf16, #tpu.memory_space<vmem>>, %arg4: memref<8x32x4xbf16, #tpu.memory_space<vmem>>, %arg5: memref<8x4x32xbf16, #tpu.memory_space<vmem>>, %arg6: memref<1x32xf32, #tpu.memory_space<vmem>>, %arg7: memref<1x8x32xf32, #tpu.memory_space<vmem>>) attributes {dimension_semantics = [#tpu.dimension_semantics<parallel>], iteration_bounds = array<i64: 2>, scalar_prefetch = 0 : i64, scratch_operands = 0 : i64, tpu.core_type = #tpu.core_type<tc>, window_params = [{transform_indices = @transform_0, window_bounds = array<i64: 1, 8, 32>}, {pipeline_mode = #tpu.pipeline_mode<synchronous>, transform_indices = @transform_1, window_bounds = array<i64: 8, 32, 4>}, {pipeline_mode = #tpu.pipeline_mode<synchronous>, transform_indices = @transform_2, window_bounds = array<i64: 8, 32, 4>}, {pipeline_mode = #tpu.pipeline_mode<synchronous>, transform_indices = @transform_3, window_bounds = array<i64: 8, 32, 4>}, {pipeline_mode = #tpu.pipeline_mode<synchronous>, transform_indices = @transform_4, window_bounds = array<i64: 8, 4, 32>}, {pipeline_mode = #tpu.pipeline_mode<synchronous>, transform_indices = @transform_5, window_bounds = array<i64: 1, 32>}, {transform_indices = @transform_6, window_bounds = array<i64: 1, 8, 32>}]} {
    %c0 = arith.constant 0 : index
    %c0_0 = arith.constant 0 : index
    %c0_1 = arith.constant 0 : index
    %0 = vector.load %arg1[%c0, %c0_0, %c0_1] : memref<1x8x32xf32, #tpu.memory_space<vmem>>, vector<1x8x32xf32>
    %1 = vector.shape_cast %0 : vector<1x8x32xf32> to vector<8x32xf32>
    %2 = arith.truncf %1 : vector<8x32xf32> to vector<8x32xbf16>
    %3 = vector.shape_cast %2 : vector<8x32xbf16> to vector<1x8x32xbf16>
    %4 = vector.shape_cast %3 : vector<1x8x32xbf16> to vector<1x8x32xbf16>
    %5 = vector.broadcast %4 : vector<1x8x32xbf16> to vector<8x8x32xbf16>
    %c0_2 = arith.constant 0 : index
    %c0_3 = arith.constant 0 : index
    %c0_4 = arith.constant 0 : index
    %6 = vector.load %arg2[%c0_2, %c0_3, %c0_4] : memref<8x32x4xbf16, #tpu.memory_space<vmem>>, vector<8x32x4xbf16>
    %cst = arith.constant dense<0.000000e+00> : vector<8x8x4xf32>
    %7 = tpu.matmul %5, %6, %cst {dimension_numbers = #tpu.dot_dimension_numbers<[2], [1], [1], [2], [0, 0, 0, 1, 1, 2], [0], [0]>} : vector<8x8x32xbf16>, vector<8x32x4xbf16>, vector<8x8x4xf32> -> vector<8x8x4xf32>
    %c0_5 = arith.constant 0 : index
    %c0_6 = arith.constant 0 : index
    %c0_7 = arith.constant 0 : index
    %8 = vector.load %arg3[%c0_5, %c0_6, %c0_7] : memref<8x32x4xbf16, #tpu.memory_space<vmem>>, vector<8x32x4xbf16>
    %cst_8 = arith.constant dense<0.000000e+00> : vector<8x8x4xf32>
    %9 = tpu.matmul %5, %8, %cst_8 {dimension_numbers = #tpu.dot_dimension_numbers<[2], [1], [1], [2], [0, 0, 0, 1, 1, 2], [0], [0]>} : vector<8x8x32xbf16>, vector<8x32x4xbf16>, vector<8x8x4xf32> -> vector<8x8x4xf32>
    %c0_9 = arith.constant 0 : index
    %c0_10 = arith.constant 0 : index
    %c0_11 = arith.constant 0 : index
    %10 = vector.load %arg4[%c0_9, %c0_10, %c0_11] : memref<8x32x4xbf16, #tpu.memory_space<vmem>>, vector<8x32x4xbf16>
    %cst_12 = arith.constant dense<0.000000e+00> : vector<8x8x4xf32>
    %11 = tpu.matmul %5, %10, %cst_12 {dimension_numbers = #tpu.dot_dimension_numbers<[2], [1], [1], [2], [0, 0, 0, 1, 1, 2], [0], [0]>} : vector<8x8x32xbf16>, vector<8x32x4xbf16>, vector<8x8x4xf32> -> vector<8x8x4xf32>
    %cst_13 = arith.constant 5.000000e-01 : f32
    %12 = vector.broadcast %cst_13 : f32 to vector<8x8x4xf32>
    %13 = arith.mulf %7, %12 : vector<8x8x4xf32>
    %14 = arith.truncf %13 : vector<8x8x4xf32> to vector<8x8x4xbf16>
    %15 = arith.truncf %9 : vector<8x8x4xf32> to vector<8x8x4xbf16>
    %16 = arith.truncf %11 : vector<8x8x4xf32> to vector<8x8x4xbf16>
    %cst_14 = arith.constant dense<0.000000e+00> : vector<8x8x8xf32>
    %17 = tpu.matmul %14, %15, %cst_14 {dimension_numbers = #tpu.dot_dimension_numbers<[2], [2], [1], [1], [0, 0, 0, 1, 1, 1], [0], [0]>} : vector<8x8x4xbf16>, vector<8x8x4xbf16>, vector<8x8x8xf32> -> vector<8x8x8xf32>
    %cst_15 = arith.constant dense<0xFF800000> : vector<8x8xf32>
    %18 = vector.multi_reduction <maximumf>, %17, %cst_15 [2] : vector<8x8x8xf32> to vector<8x8xf32>
    %19 = vector.shape_cast %18 : vector<8x8xf32> to vector<8x8x1xf32>
    %20 = vector.broadcast %19 : vector<8x8x1xf32> to vector<8x8x8xf32>
    %21 = arith.subf %17, %20 : vector<8x8x8xf32>
    %22 = math.exp %21 : vector<8x8x8xf32>
    %cst_16 = arith.constant dense<0.000000e+00> : vector<8x8xf32>
    %23 = vector.multi_reduction <add>, %22, %cst_16 [2] : vector<8x8x8xf32> to vector<8x8xf32>
    %24 = vector.shape_cast %23 : vector<8x8xf32> to vector<8x8x1xf32>
    %25 = tpu.reciprocal %24 {approx = true} : vector<8x8x1xf32> -> vector<8x8x1xf32>
    %26 = vector.broadcast %25 : vector<8x8x1xf32> to vector<8x8x8xf32>
    %27 = arith.mulf %22, %26 : vector<8x8x8xf32>
    %28 = arith.truncf %27 : vector<8x8x8xf32> to vector<8x8x8xbf16>
    %cst_17 = arith.constant dense<0.000000e+00> : vector<8x8x4xf32>
    %29 = tpu.matmul %28, %16, %cst_17 {dimension_numbers = #tpu.dot_dimension_numbers<[2], [1], [1], [2], [0, 0, 0, 1, 1, 2], [0], [0]>} : vector<8x8x8xbf16>, vector<8x8x4xbf16>, vector<8x8x4xf32> -> vector<8x8x4xf32>
    %30 = arith.truncf %29 : vector<8x8x4xf32> to vector<8x8x4xbf16>
    %c0_18 = arith.constant 0 : index
    %c0_19 = arith.constant 0 : index
    %c0_20 = arith.constant 0 : index
    %31 = vector.load %arg5[%c0_18, %c0_19, %c0_20] : memref<8x4x32xbf16, #tpu.memory_space<vmem>>, vector<8x4x32xbf16>
    %cst_21 = arith.constant dense<0.000000e+00> : vector<8x8x32xf32>
    %32 = tpu.matmul %30, %31, %cst_21 {dimension_numbers = #tpu.dot_dimension_numbers<[2], [1], [1], [2], [0, 0, 0, 1, 1, 2], [0], [0]>} : vector<8x8x4xbf16>, vector<8x4x32xbf16>, vector<8x8x32xf32> -> vector<8x8x32xf32>
    %cst_22 = arith.constant dense<0.000000e+00> : vector<8x32xf32>
    %33 = vector.multi_reduction <add>, %32, %cst_22 [0] : vector<8x8x32xf32> to vector<8x32xf32>
    %c0_23 = arith.constant 0 : index
    %c0_24 = arith.constant 0 : index
    %34 = vector.load %arg6[%c0_23, %c0_24] : memref<1x32xf32, #tpu.memory_space<vmem>>, vector<1x32xf32>
    %35 = vector.broadcast %34 : vector<1x32xf32> to vector<8x32xf32>
    %36 = arith.addf %33, %35 : vector<8x32xf32>
    %c0_25 = arith.constant 0 : index
    %c0_26 = arith.constant 0 : index
    %c0_27 = arith.constant 0 : index
    %37 = vector.load %arg7[%c0_25, %c0_26, %c0_27] : memref<1x8x32xf32, #tpu.memory_space<vmem>>, vector<1x8x32xf32>
    %38 = vector.shape_cast %37 : vector<1x8x32xf32> to vector<8x32xf32>
    %39 = vector.shape_cast %36 : vector<8x32xf32> to vector<1x8x32xf32>
    tpu.vector_store %arg7[%c0_25, %c0_26, %c0_27], %39 {strides = array<i32>} : memref<1x8x32xf32, #tpu.memory_space<vmem>>, vector<1x8x32xf32>,
    return
  }
  func.func @transform_0(%arg0: i32) -> (i32, i32, i32) {
    %c0_i32 = arith.constant 0 : i32
    %c0_i32_0 = arith.constant 0 : i32
    %c0_i32_1 = arith.constant 0 : i32
    return %arg0, %c0_i32, %c0_i32_0 : i32, i32, i32
  }
  func.func @transform_1(%arg0: i32) -> (i32, i32, i32) {
    %c0_i32 = arith.constant 0 : i32
    %c0_i32_0 = arith.constant 0 : i32
    %c0_i32_1 = arith.constant 0 : i32
    %c0_i32_2 = arith.constant 0 : i32
    return %c0_i32, %c0_i32_0, %c0_i32_1 : i32, i32, i32
  }
  func.func @transform_2(%arg0: i32) -> (i32, i32, i32) {
    %c0_i32 = arith.constant 0 : i32
    %c0_i32_0 = arith.constant 0 : i32
    %c0_i32_1 = arith.constant 0 : i32
    %c0_i32_2 = arith.constant 0 : i32
    return %c0_i32, %c0_i32_0, %c0_i32_1 : i32, i32, i32
  }
  func.func @transform_3(%arg0: i32) -> (i32, i32, i32) {
    %c0_i32 = arith.constant 0 : i32
    %c0_i32_0 = arith.constant 0 : i32
    %c0_i32_1 = arith.constant 0 : i32
    %c0_i32_2 = arith.constant 0 : i32
    return %c0_i32, %c0_i32_0, %c0_i32_1 : i32, i32, i32
  }
  func.func @transform_4(%arg0: i32) -> (i32, i32, i32) {
    %c0_i32 = arith.constant 0 : i32
    %c0_i32_0 = arith.constant 0 : i32
    %c0_i32_1 = arith.constant 0 : i32
    %c0_i32_2 = arith.constant 0 : i32
    return %c0_i32, %c0_i32_0, %c0_i32_1 : i32, i32, i32
  }
  func.func @transform_5(%arg0: i32) -> (i32, i32) {
    %c0_i32 = arith.constant 0 : i32
    %c0_i32_0 = arith.constant 0 : i32
    %c0_i32_1 = arith.constant 0 : i32
    return %c0_i32, %c0_i32_0 : i32, i32
  }
  func.func @transform_6(%arg0: i32) -> (i32, i32, i32) {
    %c0_i32 = arith.constant 0 : i32
    %c0_i32_0 = arith.constant 0 : i32
    %c0_i32_1 = arith.constant 0 : i32
    return %arg0, %c0_i32, %c0_i32_0 : i32, i32, i32
  }
}

</mosaic_0001>

<llo_original>
// kernel: tpu_custom_call.1
$region0: #{tpu_custom_call.1}
  #allocation0 [shape = 'u32[]', space=smem, size = 0x4, offset = 0x4, fixed_abs, tag = 'smem constant byte address 0x4 - core index']
  #allocation1 [shape = 'u32[144,128]{1,0:T(1,128)}', space=vmem, size = 0x12000, scoped, tag = 'internal scratch']
  %s0 = inlined_call_operand.vmem [shape: f32[2,8,32], index: 0, kind: input, shape index: {}]
  %s1 = inlined_call_operand.vmem [shape: bf16[8,32,4], index: 1, kind: input, shape index: {}]
  %s2 = inlined_call_operand.vmem [shape: bf16[8,32,4], index: 2, kind: input, shape index: {}]
  %s3 = inlined_call_operand.vmem [shape: bf16[8,32,4], index: 3, kind: input, shape index: {}]
  %s4 = inlined_call_operand.vmem [shape: bf16[8,4,32], index: 4, kind: input, shape index: {}]
  %s5 = inlined_call_operand.vmem [shape: f32[1,32], index: 5, kind: input, shape index: {}]
  %s6 = inlined_call_operand.hbm [shape: f32[2,8,32], index: 6, kind: output, shape index: {}]
  %s7 = sld [smem:[#allocation0]]
  $region57: #{tpu_custom_call.1} parent=0
    _
  %s9 = ssub.s32 1, %s7
  %s10 = scalar_select 0, %s9, %s7
  $region1: #{tpu_custom_call.1} parent=0
    #allocation2 [shape = 'u8[8192]{0}', space=vmem, size = 0x2000, scoped, tag = 'output window, operand 0']
    #allocation3 [shape = 's32[2]{0}', space=sflag, size = 0x8, scoped, tag = 'scoped memory for tpu_custom_call.1']
    %11 = vsyncpa [#allocation3], 0
    %s12 = scalar_lea.sflag [#allocation3], 1
    %13 = vsyncpa %s12, 0
    loop: start=0, step=1, limit=4
    $region2: #{tpu_custom_call.1} parent=1 // loop_pre_header
      _
    $region3: #{tpu_custom_call.1} parent=1 // loop_header
      %s15 = sphi 0, %s19
      %p16 = scmp.ge.s32.totalorder %s15, 4
      %s25 = sphi 0, %s27
      %s28 = sphi 0, %s25
      %s29 = sphi 0, %s28
      %s45 = sphi 0, %s29
      %s49 = sphi 0, %s49
      %s51 = sphi 0, %s49
      %s52 = sphi 0, %s51
      %s66 = sphi 0, %s52
      %s70 = sphi 0, %s70
      %s72 = sphi 0, %s70
      %s73 = sphi 0, %s72
      %s87 = sphi 0, %s73
      %s91 = sphi 0, %s91
      %s93 = sphi 0, %s91
      %s94 = sphi 0, %s93
      %s108 = sphi 0, %s94
      %s112 = sphi 0, %s112
      %s114 = sphi 0, %s112
      %s115 = sphi 0, %s114
      %s129 = sphi 0, %s115
      %s133 = sphi 0, %s133
      %s135 = sphi 0, %s133
      %s136 = sphi 0, %s135
      %s150 = sphi 0, %s136
      %s156 = sphi 0, %s158
      %s159 = sphi 0, %s156
      %s160 = sphi 0, %s159
      %s176 = sphi 0, %s160
    $region4: #{tpu_custom_call.1} parent=1 // loop_header_branch
      %18 = sbr.rel (%p16) target = $region8
    $region5: #{tpu_custom_call.1} parent=1 // loop_body
      %s20 = ssub.s32 %s15, 1
      %s21 = ssub.s32 %s15, 2
      %s22 = sadd.s32 %s15, 1
      %s23 = ssub.s32 %s15, %s22
      %p24 = scmp.eq.s32.totalorder %s23, 0
      %s26 = sadd.s32 %s25, 1
      %s27 = scalar_select %p24, %s25, %s26
      %p30 = pneg %p24
      %p31 = scmp.eq.s32.totalorder %s15, 1
      %p32 = por %p30, %p31
      %p33 = scmp.ne.s32.totalorder %s25, %s28
      %p34 = scmp.eq.s32.totalorder %s15, 0
      %p35 = por %p33, %p34
      %p36 = scmp.ne.s32.totalorder %s25, %s28
      %p37 = scmp.eq.s32.totalorder %s20, 1
      %p38 = por %p36, %p37
      %p39 = scmp.ne.s32.totalorder %s28, %s29
      %p40 = scmp.eq.s32.totalorder %s20, 0
      %p41 = por %p39, %p40
      %p42 = scmp.ne.s32.totalorder %s28, %s29
      %p43 = scmp.eq.s32.totalorder %s21, 1
      %p44 = por %p42, %p43
      %p46 = scmp.ne.s32.totalorder %s29, %s45
      %p47 = scmp.eq.s32.totalorder %s21, 0
      %p48 = por %p46, %p47
      %s50 = sadd.s32 %s49, 1
      %p53 = scmp.eq.s32.totalorder %s15, 1
      %p54 = scmp.ne.s32.totalorder %s49, %s51
      %p55 = scmp.eq.s32.totalorder %s15, 0
      %p56 = por %p54, %p55
      %p57 = scmp.ne.s32.totalorder %s49, %s51
      %p58 = scmp.eq.s32.totalorder %s20, 1
      %p59 = por %p57, %p58
      %p60 = scmp.ne.s32.totalorder %s51, %s52
      %p61 = scmp.eq.s32.totalorder %s20, 0
      %p62 = por %p60, %p61
      %p63 = scmp.ne.s32.totalorder %s51, %s52
      %p64 = scmp.eq.s32.totalorder %s21, 1
      %p65 = por %p63, %p64
      %p67 = scmp.ne.s32.totalorder %s52, %s66
      %p68 = scmp.eq.s32.totalorder %s21, 0
      %p69 = por %p67, %p68
      %s71 = sadd.s32 %s70, 1
      %p74 = scmp.eq.s32.totalorder %s15, 1
      %p75 = scmp.ne.s32.totalorder %s70, %s72
      %p76 = scmp.eq.s32.totalorder %s15, 0
      %p77 = por %p75, %p76
      %p78 = scmp.ne.s32.totalorder %s70, %s72
      %p79 = scmp.eq.s32.totalorder %s20, 1
      %p80 = por %p78, %p79
      %p81 = scmp.ne.s32.totalorder %s72, %s73
      %p82 = scmp.eq.s32.totalorder %s20, 0
      %p83 = por %p81, %p82
      %p84 = scmp.ne.s32.totalorder %s72, %s73
      %p85 = scmp.eq.s32.totalorder %s21, 1
      %p86 = por %p84, %p85
      %p88 = scmp.ne.s32.totalorder %s73, %s87
      %p89 = scmp.eq.s32.totalorder %s21, 0
      %p90 = por %p88, %p89
      %s92 = sadd.s32 %s91, 1
      %p95 = scmp.eq.s32.totalorder %s15, 1
      %p96 = scmp.ne.s32.totalorder %s91, %s93
      %p97 = scmp.eq.s32.totalorder %s15, 0
      %p98 = por %p96, %p97
      %p99 = scmp.ne.s32.totalorder %s91, %s93
      %p100 = scmp.eq.s32.totalorder %s20, 1
      %p101 = por %p99, %p100
      %p102 = scmp.ne.s32.totalorder %s93, %s94
      %p103 = scmp.eq.s32.totalorder %s20, 0
      %p104 = por %p102, %p103
      %p105 = scmp.ne.s32.totalorder %s93, %s94
      %p106 = scmp.eq.s32.totalorder %s21, 1
      %p107 = por %p105, %p106
      %p109 = scmp.ne.s32.totalorder %s94, %s108
      %p110 = scmp.eq.s32.totalorder %s21, 0
      %p111 = por %p109, %p110
      %s113 = sadd.s32 %s112, 1
      %p116 = scmp.eq.s32.totalorder %s15, 1
      %p117 = scmp.ne.s32.totalorder %s112, %s114
      %p118 = scmp.eq.s32.totalorder %s15, 0
      %p119 = por %p117, %p118
      %p120 = scmp.ne.s32.totalorder %s112, %s114
      %p121 = scmp.eq.s32.totalorder %s20, 1
      %p122 = por %p120, %p121
      %p123 = scmp.ne.s32.totalorder %s114, %s115
      %p124 = scmp.eq.s32.totalorder %s20, 0
      %p125 = por %p123, %p124
      %p126 = scmp.ne.s32.totalorder %s114, %s115
      %p127 = scmp.eq.s32.totalorder %s21, 1
      %p128 = por %p126, %p127
      %p130 = scmp.ne.s32.totalorder %s115, %s129
      %p131 = scmp.eq.s32.totalorder %s21, 0
      %p132 = por %p130, %p131
      %s134 = sadd.s32 %s133, 1
      %p137 = scmp.eq.s32.totalorder %s15, 1
      %p138 = scmp.ne.s32.totalorder %s133, %s135
      %p139 = scmp.eq.s32.totalorder %s15, 0
      %p140 = por %p138, %p139
      %p141 = scmp.ne.s32.totalorder %s133, %s135
      %p142 = scmp.eq.s32.totalorder %s20, 1
      %p143 = por %p141, %p142
      %p144 = scmp.ne.s32.totalorder %s135, %s136
      %p145 = scmp.eq.s32.totalorder %s20, 0
      %p146 = por %p144, %p145
      %p147 = scmp.ne.s32.totalorder %s135, %s136
      %p148 = scmp.eq.s32.totalorder %s21, 1
      %p149 = por %p147, %p148
      %p151 = scmp.ne.s32.totalorder %s136, %s150
      %p152 = scmp.eq.s32.totalorder %s21, 0
      %p153 = por %p151, %p152
      %s154 = ssub.s32 %s15, %s22
      %p155 = scmp.eq.s32.totalorder %s154, 0
      %s157 = sadd.s32 %s156, 1
      %s158 = scalar_select %p155, %s156, %s157
      %p161 = pneg %p155
      %p162 = scmp.eq.s32.totalorder %s15, 1
      %p163 = por %p161, %p162
      %p164 = scmp.ne.s32.totalorder %s156, %s159
      %p165 = scmp.eq.s32.totalorder %s15, 0
      %p166 = por %p164, %p165
      %p167 = scmp.ne.s32.totalorder %s156, %s159
      %p168 = scmp.eq.s32.totalorder %s20, 1
      %p169 = por %p167, %p168
      %p170 = scmp.ne.s32.totalorder %s159, %s160
      %p171 = scmp.eq.s32.totalorder %s20, 0
      %p172 = por %p170, %p171
      %p173 = scmp.ne.s32.totalorder %s159, %s160
      %p174 = scmp.eq.s32.totalorder %s21, 1
      %p175 = por %p173, %p174
      %p177 = scmp.ne.s32.totalorder %s160, %s176
      %p178 = scmp.eq.s32.totalorder %s21, 0
      %p179 = por %p177, %p178
      %p180 = scmp.le.s32.totalorder 1, %s15
      %p181 = scmp.lt.s32.totalorder %s15, 3
      %p182 = pnand %p180, %p181
      %p183 = pneg %p182
      // Predicated region
      $region9: #{tpu_custom_call.1} parent=5 // pred_check
        _
      $region10: #{tpu_custom_call.1} parent=5 // pred_check_branch
        %185 = sbr.rel (%p182) target = $region12
      $region11: #{tpu_custom_call.1} parent=5 // pred_region
        %s186 = ssub.s32 %s15, 1
        // Predicated region
        $region13: #{tpu_custom_call.1} parent=11 // pred_check
          %p187 = pneg %p62
        $region14: #{tpu_custom_call.1} parent=11 // pred_check_branch
          %189 = sbr.rel (%p187) target = $region16
        $region15: #{tpu_custom_call.1} parent=11 // pred_region
          _
        $region16: #{tpu_custom_call.1} parent=11 // pred_fallthru
          _
        // Predicated region
        $region17: #{tpu_custom_call.1} parent=11 // pred_check
          %p190 = pneg %p83
        $region18: #{tpu_custom_call.1} parent=11 // pred_check_branch
          %192 = sbr.rel (%p190) target = $region20
        $region19: #{tpu_custom_call.1} parent=11 // pred_region
          _
        $region20: #{tpu_custom_call.1} parent=11 // pred_fallthru
          _
        // Predicated region
        $region21: #{tpu_custom_call.1} parent=11 // pred_check
          %p193 = pneg %p104
        $region22: #{tpu_custom_call.1} parent=11 // pred_check_branch
          %195 = sbr.rel (%p193) target = $region24
        $region23: #{tpu_custom_call.1} parent=11 // pred_region
          _
        $region24: #{tpu_custom_call.1} parent=11 // pred_fallthru
          _
        // Predicated region
        $region25: #{tpu_custom_call.1} parent=11 // pred_check
          %p196 = pneg %p125
        $region26: #{tpu_custom_call.1} parent=11 // pred_check_branch
          %198 = sbr.rel (%p196) target = $region28
        $region27: #{tpu_custom_call.1} parent=11 // pred_region
          _
        $region28: #{tpu_custom_call.1} parent=11 // pred_fallthru
          _
        // Predicated region
        $region29: #{tpu_custom_call.1} parent=11 // pred_check
          %p199 = pneg %p146
        $region30: #{tpu_custom_call.1} parent=11 // pred_check_branch
          %201 = sbr.rel (%p199) target = $region32
        $region31: #{tpu_custom_call.1} parent=11 // pred_region
          _
        $region32: #{tpu_custom_call.1} parent=11 // pred_fallthru
          _
      $region12: #{tpu_custom_call.1} parent=5 // pred_fallthru
        _
      %p202 = scmp.lt.s32.totalorder %s15, 2
      // Predicated region
      $region33: #{tpu_custom_call.1} parent=5 // pred_check
        %p203 = pneg %p202
      $region34: #{tpu_custom_call.1} parent=5 // pred_check_branch
        %205 = sbr.rel (%p203) target = $region36
      $region35: #{tpu_custom_call.1} parent=5 // pred_region
        // Predicated region
        $region37: #{tpu_custom_call.1} parent=35 // pred_check
          %p206 = pneg %p35
        $region38: #{tpu_custom_call.1} parent=35 // pred_check_branch
          %208 = sbr.rel (%p206) target = $region40
        $region39: #{tpu_custom_call.1} parent=35 // pred_region
          %p209 = scmp.lt.s32.totalorder %s15, 1
          %s210 = scalar_select %p209, %s15, 1
          %s211 = smul.addr %s210, 8
          %s212 = scalar_lea.vmem %s0, %s211
        $region40: #{tpu_custom_call.1} parent=35 // pred_fallthru
          _
      $region36: #{tpu_custom_call.1} parent=5 // pred_fallthru
        _
      %p213 = scmp.le.s32.totalorder 1, %s15
      %p214 = scmp.lt.s32.totalorder %s15, 3
      %p215 = pnand %p213, %p214
      %p216 = pneg %p215
      // Predicated region
      $region41: #{tpu_custom_call.1} parent=5 // pred_check
        _
      $region42: #{tpu_custom_call.1} parent=5 // pred_check_branch
        %218 = sbr.rel (%p215) target = $region44
      $region43: #{tpu_custom_call.1} parent=5 // pred_region
        %s219 = ssub.s32 %s15, 1
        %p220 = scmp.lt.s32.totalorder %s20, 1
        %s221 = scalar_select %p220, %s20, 1
        %s222 = smul.addr %s221, 8
        %s223 = scalar_lea.vmem %s0, %s222
        %p224 = pneg %p41
        %p225 = pneg %p38
        %p226 = pneg %p62
        %p227 = pneg %p59
        %p228 = pneg %p83
        %p229 = pneg %p80
        %p230 = pneg %p104
        %p231 = pneg %p101
        %p232 = pneg %p125
        %p233 = pneg %p122
        %p234 = pneg %p146
        %p235 = pneg %p143
        %p236 = pneg %p172
        %p237 = pneg %p169
        %s238 = sand.u32 %s159, 1
        %s239 = scalar_lea.sflag [#allocation3], %s238
        %s240 = sand.u32 %s159, 1
        %s241 = smul.addr %s240, 8
        %s242 = scalar_lea.vmem [#allocation2], %s241
        %p243 = scmp.lt.s32.totalorder %s20, 1
        %s244 = scalar_select %p243, %s20, 1
        %s245 = smul.addr %s244, 8
        %s246 = scalar_lea.vmem %s0, %s245
        %v248 = vld [vmem:[%s246] sm:$0xff]
        %v249 = vpack.c.bf16 %v248, %v248
        %v250 = vld [vmem:[%s1] sm:$0xf]
        %v251 = vld [vmem:[%s1 + $0x4] sm:$0xf]
        %v252 = vld [vmem:[%s1 + $0x8] sm:$0xf]
        %v253 = vld [vmem:[%s1 + $0xc] sm:$0xf]
        %v254 = vld [vmem:[%s1 + $0x10] sm:$0xf]
        %v255 = vld [vmem:[%s1 + $0x14] sm:$0xf]
        %v256 = vld [vmem:[%s1 + $0x18] sm:$0xf]
        %v257 = vld [vmem:[%s1 + $0x1c] sm:$0xf]
        %v258 = vld [vmem:[%s1 + $0x20] sm:$0xf]
        %v259 = vld [vmem:[%s1 + $0x24] sm:$0xf]
        %v260 = vld [vmem:[%s1 + $0x28] sm:$0xf]
        %v261 = vld [vmem:[%s1 + $0x2c] sm:$0xf]
        %v262 = vld [vmem:[%s1 + $0x30] sm:$0xf]
        %v263 = vld [vmem:[%s1 + $0x34] sm:$0xf]
        %v264 = vld [vmem:[%s1 + $0x38] sm:$0xf]
        %v265 = vld [vmem:[%s1 + $0x3c] sm:$0xf]
        %v266 = vld [vmem:[%s1 + $0x40] sm:$0xf]
        %v267 = vld [vmem:[%s1 + $0x44] sm:$0xf]
        %v268 = vld [vmem:[%s1 + $0x48] sm:$0xf]
        %v269 = vld [vmem:[%s1 + $0x4c] sm:$0xf]
        %v270 = vld [vmem:[%s1 + $0x50] sm:$0xf]
        %v271 = vld [vmem:[%s1 + $0x54] sm:$0xf]
        %v272 = vld [vmem:[%s1 + $0x58] sm:$0xf]
        %v273 = vld [vmem:[%s1 + $0x5c] sm:$0xf]
        %v274 = vld [vmem:[%s1 + $0x60] sm:$0xf]
        %v275 = vld [vmem:[%s1 + $0x64] sm:$0xf]
        %v276 = vld [vmem:[%s1 + $0x68] sm:$0xf]
        %v277 = vld [vmem:[%s1 + $0x6c] sm:$0xf]
        %v278 = vld [vmem:[%s1 + $0x70] sm:$0xf]
        %v279 = vld [vmem:[%s1 + $0x74] sm:$0xf]
        %v280 = vld [vmem:[%s1 + $0x78] sm:$0xf]
        %v281 = vld [vmem:[%s1 + $0x7c] sm:$0xf]
        %v286 = vunpack.c.l.b16 %v250
        %v287 = vunpack.c.l.b16 %v251
        %v288 = vunpack.c.l.b16 %v252
        %v289 = vunpack.c.l.b16 %v253
        %v290 = vpack.c.b16 %v287, %v286
        %v291 = vpack.c.b16 %v289, %v288
        %vm294 = vcmask 261120
        %v296 = vsel %vm294, %v249, 0
        %298 = vmatprep.subr.bf16.mxu0 0
        %299 = vmatpush1.bf16.msra.mxu0 0
        %300 = vmatprep.subr.bf16.mxu0 0
        %301 = vmatpush1.bf16.msra.mxu0 0
        %302 = vmatprep.subr.bf16.mxu0 0
        %303 = vmatpush1.bf16.msra.mxu0 0
        %304 = vmatprep.subr.bf16.mxu0 0
        %305 = vmatpush1.bf16.msra.mxu0 0
        %306 = vmatprep.subr.bf16.mxu0 0
        %307 = vmatpush1.bf16.msra.mxu0 0
        %308 = vmatprep.subr.bf16.mxu0 0
        %309 = vmatpush1.bf16.msra.mxu0 0
        %310 = vmatprep.subr.bf16.mxu0 0
        %311 = vmatpush1.bf16.msra.mxu0 %v291
        %312 = vmatprep.subr.bf16.mxu0 0
        %313 = vmatpush1.bf16.msra.mxu0 %v290
        %314 = vmatprep.subr.bf16.mxu0 0
        %315 = vmatpush2.bf16.msra.mxu0 0
        %316 = vmatprep.subr.bf16.mxu0 0
        %317 = vmatpush2.bf16.msra.mxu0 0
        %318 = vmatprep.subr.bf16.mxu0 0
        %319 = vmatpush2.bf16.msra.mxu0 0
        %320 = vmatprep.subr.bf16.mxu0 0
        %321 = vmatpush2.bf16.msra.mxu0 0
        %322 = vmatprep.subr.bf16.mxu0 0
        %323 = vmatpush2.bf16.msra.mxu0 0
        %324 = vmatprep.subr.bf16.mxu0 0
        %325 = vmatpush2.bf16.msra.mxu0 0
        %326 = vmatprep.subr.bf16.mxu0 0
        %327 = vmatpush2.bf16.msra.mxu0 0
        %328 = vmatprep.subr.bf16.mxu0 0
        %329 = vmatpush2.bf16.msra.mxu0 0
        %330 = vmatprep.mubr.bf16.mxu0 0
        %331 = vmatmul.mubr.bf16.gmra.mxu0 %v296
        %v332 = vpop.f32.mrf.mxu0
        %v333 = vadd.f32 0.0, %v332
        %v334 = vpop.f32.mrf.mxu0
        %v335 = vpop.f32.mrf.mxu0
        %v336 = vpop.f32.mrf.mxu0
        %337 = vdwg.mxu0
        %v342 = vunpack.c.l.b16 %v254
        %v343 = vunpack.c.l.b16 %v255
        %v344 = vunpack.c.l.b16 %v256
        %v345 = vunpack.c.l.b16 %v257
        %v346 = vpack.c.b16 %v343, %v342
        %v347 = vpack.c.b16 %v345, %v344
        %350 = vmatprep.subr.bf16.mxu0 0
        %351 = vmatpush1.bf16.msra.mxu0 0
        %352 = vmatprep.subr.bf16.mxu0 0
        %353 = vmatpush1.bf16.msra.mxu0 0
        %354 = vmatprep.subr.bf16.mxu0 0
        %355 = vmatpush1.bf16.msra.mxu0 0
        %356 = vmatprep.subr.bf16.mxu0 0
        %357 = vmatpush1.bf16.msra.mxu0 0
        %358 = vmatprep.subr.bf16.mxu0 0
        %359 = vmatpush1.bf16.msra.mxu0 0
        %360 = vmatprep.subr.bf16.mxu0 0
        %361 = vmatpush1.bf16.msra.mxu0 0
        %362 = vmatprep.subr.bf16.mxu0 0
        %363 = vmatpush1.bf16.msra.mxu0 %v347
        %364 = vmatprep.subr.bf16.mxu0 0
        %365 = vmatpush1.bf16.msra.mxu0 %v346
        %366 = vmatprep.subr.bf16.mxu0 0
        %367 = vmatpush2.bf16.msra.mxu0 0
        %368 = vmatprep.subr.bf16.mxu0 0
        %369 = vmatpush2.bf16.msra.mxu0 0
        %370 = vmatprep.subr.bf16.mxu0 0
        %371 = vmatpush2.bf16.msra.mxu0 0
        %372 = vmatprep.subr.bf16.mxu0 0
        %373 = vmatpush2.bf16.msra.mxu0 0
        %374 = vmatprep.subr.bf16.mxu0 0
        %375 = vmatpush2.bf16.msra.mxu0 0
        %376 = vmatprep.subr.bf16.mxu0 0
        %377 = vmatpush2.bf16.msra.mxu0 0
        %378 = vmatprep.subr.bf16.mxu0 0
        %379 = vmatpush2.bf16.msra.mxu0 0
        %380 = vmatprep.subr.bf16.mxu0 0
        %381 = vmatpush2.bf16.msra.mxu0 0
        %382 = vmatprep.mubr.bf16.mxu0 0
        %383 = vmatmul.mubr.bf16.gmra.mxu0 %v296
        %v384 = vpop.f32.mrf.mxu0
        %v385 = vadd.f32 0.0, %v384
        %v386 = vpop.f32.mrf.mxu0
        %v387 = vpop.f32.mrf.mxu0
        %v388 = vpop.f32.mrf.mxu0
        %389 = vdwg.mxu0
        %v394 = vunpack.c.l.b16 %v258
        %v395 = vunpack.c.l.b16 %v259
        %v396 = vunpack.c.l.b16 %v260
        %v397 = vunpack.c.l.b16 %v261
        %v398 = vpack.c.b16 %v395, %v394
        %v399 = vpack.c.b16 %v397, %v396
        %402 = vmatprep.subr.bf16.mxu0 0
        %403 = vmatpush1.bf16.msra.mxu0 0
        %404 = vmatprep.subr.bf16.mxu0 0
        %405 = vmatpush1.bf16.msra.mxu0 0
        %406 = vmatprep.subr.bf16.mxu0 0
        %407 = vmatpush1.bf16.msra.mxu0 0
        %408 = vmatprep.subr.bf16.mxu0 0
        %409 = vmatpush1.bf16.msra.mxu0 0
        %410 = vmatprep.subr.bf16.mxu0 0
        %411 = vmatpush1.bf16.msra.mxu0 0
        %412 = vmatprep.subr.bf16.mxu0 0
        %413 = vmatpush1.bf16.msra.mxu0 0
        %414 = vmatprep.subr.bf16.mxu0 0
        %415 = vmatpush1.bf16.msra.mxu0 %v399
        %416 = vmatprep.subr.bf16.mxu0 0
        %417 = vmatpush1.bf16.msra.mxu0 %v398
        %418 = vmatprep.subr.bf16.mxu0 0
        %419 = vmatpush2.bf16.msra.mxu0 0
        %420 = vmatprep.subr.bf16.mxu0 0
        %421 = vmatpush2.bf16.msra.mxu0 0
        %422 = vmatprep.subr.bf16.mxu0 0
        %423 = vmatpush2.bf16.msra.mxu0 0
        %424 = vmatprep.subr.bf16.mxu0 0
        %425 = vmatpush2.bf16.msra.mxu0 0
        %426 = vmatprep.subr.bf16.mxu0 0
        %427 = vmatpush2.bf16.msra.mxu0 0
        %428 = vmatprep.subr.bf16.mxu0 0
        %429 = vmatpush2.bf16.msra.mxu0 0
        %430 = vmatprep.subr.bf16.mxu0 0
        %431 = vmatpush2.bf16.msra.mxu0 0
        %432 = vmatprep.subr.bf16.mxu0 0
        %433 = vmatpush2.bf16.msra.mxu0 0
        %434 = vmatprep.mubr.bf16.mxu0 0
        %435 = vmatmul.mubr.bf16.gmra.mxu0 %v296
        %v436 = vpop.f32.mrf.mxu0
        %v437 = vadd.f32 0.0, %v436
        %v438 = vpop.f32.mrf.mxu0
        %v439 = vpop.f32.mrf.mxu0
        %v440 = vpop.f32.mrf.mxu0
        %441 = vdwg.mxu0
        %v446 = vunpack.c.l.b16 %v262
        %v447 = vunpack.c.l.b16 %v263
        %v448 = vunpack.c.l.b16 %v264
        %v449 = vunpack.c.l.b16 %v265
        %v450 = vpack.c.b16 %v447, %v446
        %v451 = vpack.c.b16 %v449, %v448
        %454 = vmatprep.subr.bf16.mxu0 0
        %455 = vmatpush1.bf16.msra.mxu0 0
        %456 = vmatprep.subr.bf16.mxu0 0
        %457 = vmatpush1.bf16.msra.mxu0 0
        %458 = vmatprep.subr.bf16.mxu0 0
        %459 = vmatpush1.bf16.msra.mxu0 0
        %460 = vmatprep.subr.bf16.mxu0 0
        %461 = vmatpush1.bf16.msra.mxu0 0
        %462 = vmatprep.subr.bf16.mxu0 0
        %463 = vmatpush1.bf16.msra.mxu0 0
        %464 = vmatprep.subr.bf16.mxu0 0
        %465 = vmatpush1.bf16.msra.mxu0 0
        %466 = vmatprep.subr.bf16.mxu0 0
        %467 = vmatpush1.bf16.msra.mxu0 %v451
        %468 = vmatprep.subr.bf16.mxu0 0
        %469 = vmatpush1.bf16.msra.mxu0 %v450
        %470 = vmatprep.subr.bf16.mxu0 0
        %471 = vmatpush2.bf16.msra.mxu0 0
        %472 = vmatprep.subr.bf16.mxu0 0
        %473 = vmatpush2.bf16.msra.mxu0 0
        %474 = vmatprep.subr.bf16.mxu0 0
        %475 = vmatpush2.bf16.msra.mxu0 0
        %476 = vmatprep.subr.bf16.mxu0 0
        %477 = vmatpush2.bf16.msra.mxu0 0
        %478 = vmatprep.subr.bf16.mxu0 0
        %479 = vmatpush2.bf16.msra.mxu0 0
        %480 = vmatprep.subr.bf16.mxu0 0
        %481 = vmatpush2.bf16.msra.mxu0 0
        %482 = vmatprep.subr.bf16.mxu0 0
        %483 = vmatpush2.bf16.msra.mxu0 0
        %484 = vmatprep.subr.bf16.mxu0 0
        %485 = vmatpush2.bf16.msra.mxu0 0
        %486 = vmatprep.mubr.bf16.mxu0 0
        %487 = vmatmul.mubr.bf16.gmra.mxu0 %v296
        %v488 = vpop.f32.mrf.mxu0
        %v489 = vadd.f32 0.0, %v488
        %v490 = vpop.f32.mrf.mxu0
        %v491 = vpop.f32.mrf.mxu0
        %v492 = vpop.f32.mrf.mxu0
        %493 = vdwg.mxu0
        %v498 = vunpack.c.l.b16 %v266
        %v499 = vunpack.c.l.b16 %v267
        %v500 = vunpack.c.l.b16 %v268
        %v501 = vunpack.c.l.b16 %v269
        %v502 = vpack.c.b16 %v499, %v498
        %v503 = vpack.c.b16 %v501, %v500
        %506 = vmatprep.subr.bf16.mxu0 0
        %507 = vmatpush1.bf16.msra.mxu0 0
        %508 = vmatprep.subr.bf16.mxu0 0
        %509 = vmatpush1.bf16.msra.mxu0 0
        %510 = vmatprep.subr.bf16.mxu0 0
        %511 = vmatpush1.bf16.msra.mxu0 0
        %512 = vmatprep.subr.bf16.mxu0 0
        %513 = vmatpush1.bf16.msra.mxu0 0
        %514 = vmatprep.subr.bf16.mxu0 0
        %515 = vmatpush1.bf16.msra.mxu0 0
        %516 = vmatprep.subr.bf16.mxu0 0
        %517 = vmatpush1.bf16.msra.mxu0 0
        %518 = vmatprep.subr.bf16.mxu0 0
        %519 = vmatpush1.bf16.msra.mxu0 %v503
        %520 = vmatprep.subr.bf16.mxu0 0
        %521 = vmatpush1.bf16.msra.mxu0 %v502
        %522 = vmatprep.subr.bf16.mxu0 0
        %523 = vmatpush2.bf16.msra.mxu0 0
        %524 = vmatprep.subr.bf16.mxu0 0
        %525 = vmatpush2.bf16.msra.mxu0 0
        %526 = vmatprep.subr.bf16.mxu0 0
        %527 = vmatpush2.bf16.msra.mxu0 0
        %528 = vmatprep.subr.bf16.mxu0 0
        %529 = vmatpush2.bf16.msra.mxu0 0
        %530 = vmatprep.subr.bf16.mxu0 0
        %531 = vmatpush2.bf16.msra.mxu0 0
        %532 = vmatprep.subr.bf16.mxu0 0
        %533 = vmatpush2.bf16.msra.mxu0 0
        %534 = vmatprep.subr.bf16.mxu0 0
        %535 = vmatpush2.bf16.msra.mxu0 0
        %536 = vmatprep.subr.bf16.mxu0 0
        %537 = vmatpush2.bf16.msra.mxu0 0
        %538 = vmatprep.mubr.bf16.mxu0 0
        %539 = vmatmul.mubr.bf16.gmra.mxu0 %v296
        %v540 = vpop.f32.mrf.mxu0
        %v541 = vadd.f32 0.0, %v540
        %v542 = vpop.f32.mrf.mxu0
        %v543 = vpop.f32.mrf.mxu0
        %v544 = vpop.f32.mrf.mxu0
        %545 = vdwg.mxu0
        %v550 = vunpack.c.l.b16 %v270
        %v551 = vunpack.c.l.b16 %v271
        %v552 = vunpack.c.l.b16 %v272
        %v553 = vunpack.c.l.b16 %v273
        %v554 = vpack.c.b16 %v551, %v550
        %v555 = vpack.c.b16 %v553, %v552
        %558 = vmatprep.subr.bf16.mxu0 0
        %559 = vmatpush1.bf16.msra.mxu0 0
        %560 = vmatprep.subr.bf16.mxu0 0
        %561 = vmatpush1.bf16.msra.mxu0 0
        %562 = vmatprep.subr.bf16.mxu0 0
        %563 = vmatpush1.bf16.msra.mxu0 0
        %564 = vmatprep.subr.bf16.mxu0 0
        %565 = vmatpush1.bf16.msra.mxu0 0
        %566 = vmatprep.subr.bf16.mxu0 0
        %567 = vmatpush1.bf16.msra.mxu0 0
        %568 = vmatprep.subr.bf16.mxu0 0
        %569 = vmatpush1.bf16.msra.mxu0 0
        %570 = vmatprep.subr.bf16.mxu0 0
        %571 = vmatpush1.bf16.msra.mxu0 %v555
        %572 = vmatprep.subr.bf16.mxu0 0
        %573 = vmatpush1.bf16.msra.mxu0 %v554
        %574 = vmatprep.subr.bf16.mxu0 0
        %575 = vmatpush2.bf16.msra.mxu0 0
        %576 = vmatprep.subr.bf16.mxu0 0
        %577 = vmatpush2.bf16.msra.mxu0 0
        %578 = vmatprep.subr.bf16.mxu0 0
        %579 = vmatpush2.bf16.msra.mxu0 0
        %580 = vmatprep.subr.bf16.mxu0 0
        %581 = vmatpush2.bf16.msra.mxu0 0
        %582 = vmatprep.subr.bf16.mxu0 0
        %583 = vmatpush2.bf16.msra.mxu0 0
        %584 = vmatprep.subr.bf16.mxu0 0
        %585 = vmatpush2.bf16.msra.mxu0 0
        %586 = vmatprep.subr.bf16.mxu0 0
        %587 = vmatpush2.bf16.msra.mxu0 0
        %588 = vmatprep.subr.bf16.mxu0 0
        %589 = vmatpush2.bf16.msra.mxu0 0
        %590 = vmatprep.mubr.bf16.mxu0 0
        %591 = vmatmul.mubr.bf16.gmra.mxu0 %v296
        %v592 = vpop.f32.mrf.mxu0
        %v593 = vadd.f32 0.0, %v592
        %v594 = vpop.f32.mrf.mxu0
        %v595 = vpop.f32.mrf.mxu0
        %v596 = vpop.f32.mrf.mxu0
        %597 = vdwg.mxu0
        %v602 = vunpack.c.l.b16 %v274
        %v603 = vunpack.c.l.b16 %v275
        %v604 = vunpack.c.l.b16 %v276
        %v605 = vunpack.c.l.b16 %v277
        %v606 = vpack.c.b16 %v603, %v602
        %v607 = vpack.c.b16 %v605, %v604
        %610 = vmatprep.subr.bf16.mxu0 0
        %611 = vmatpush1.bf16.msra.mxu0 0
        %612 = vmatprep.subr.bf16.mxu0 0
        %613 = vmatpush1.bf16.msra.mxu0 0
        %614 = vmatprep.subr.bf16.mxu0 0
        %615 = vmatpush1.bf16.msra.mxu0 0
        %616 = vmatprep.subr.bf16.mxu0 0
        %617 = vmatpush1.bf16.msra.mxu0 0
        %618 = vmatprep.subr.bf16.mxu0 0
        %619 = vmatpush1.bf16.msra.mxu0 0
        %620 = vmatprep.subr.bf16.mxu0 0
        %621 = vmatpush1.bf16.msra.mxu0 0
        %622 = vmatprep.subr.bf16.mxu0 0
        %623 = vmatpush1.bf16.msra.mxu0 %v607
        %624 = vmatprep.subr.bf16.mxu0 0
        %625 = vmatpush1.bf16.msra.mxu0 %v606
        %626 = vmatprep.subr.bf16.mxu0 0
        %627 = vmatpush2.bf16.msra.mxu0 0
        %628 = vmatprep.subr.bf16.mxu0 0
        %629 = vmatpush2.bf16.msra.mxu0 0
        %630 = vmatprep.subr.bf16.mxu0 0
        %631 = vmatpush2.bf16.msra.mxu0 0
        %632 = vmatprep.subr.bf16.mxu0 0
        %633 = vmatpush2.bf16.msra.mxu0 0
        %634 = vmatprep.subr.bf16.mxu0 0
        %635 = vmatpush2.bf16.msra.mxu0 0
        %636 = vmatprep.subr.bf16.mxu0 0
        %637 = vmatpush2.bf16.msra.mxu0 0
        %638 = vmatprep.subr.bf16.mxu0 0
        %639 = vmatpush2.bf16.msra.mxu0 0
        %640 = vmatprep.subr.bf16.mxu0 0
        %641 = vmatpush2.bf16.msra.mxu0 0
        %642 = vmatprep.mubr.bf16.mxu0 0
        %643 = vmatmul.mubr.bf16.gmra.mxu0 %v296
        %v644 = vpop.f32.mrf.mxu0
        %v645 = vadd.f32 0.0, %v644
        %v646 = vpop.f32.mrf.mxu0
        %v647 = vpop.f32.mrf.mxu0
        %v648 = vpop.f32.mrf.mxu0
        %649 = vdwg.mxu0
        %v654 = vunpack.c.l.b16 %v278
        %v655 = vunpack.c.l.b16 %v279
        %v656 = vunpack.c.l.b16 %v280
        %v657 = vunpack.c.l.b16 %v281
        %v658 = vpack.c.b16 %v655, %v654
        %v659 = vpack.c.b16 %v657, %v656
        %662 = vmatprep.subr.bf16.mxu0 0
        %663 = vmatpush1.bf16.msra.mxu0 0
        %664 = vmatprep.subr.bf16.mxu0 0
        %665 = vmatpush1.bf16.msra.mxu0 0
        %666 = vmatprep.subr.bf16.mxu0 0
        %667 = vmatpush1.bf16.msra.mxu0 0
        %668 = vmatprep.subr.bf16.mxu0 0
        %669 = vmatpush1.bf16.msra.mxu0 0
        %670 = vmatprep.subr.bf16.mxu0 0
        %671 = vmatpush1.bf16.msra.mxu0 0
        %672 = vmatprep.subr.bf16.mxu0 0
        %673 = vmatpush1.bf16.msra.mxu0 0
        %674 = vmatprep.subr.bf16.mxu0 0
        %675 = vmatpush1.bf16.msra.mxu0 %v659
        %676 = vmatprep.subr.bf16.mxu0 0
        %677 = vmatpush1.bf16.msra.mxu0 %v658
        %678 = vmatprep.subr.bf16.mxu0 0
        %679 = vmatpush2.bf16.msra.mxu0 0
        %680 = vmatprep.subr.bf16.mxu0 0
        %681 = vmatpush2.bf16.msra.mxu0 0
        %682 = vmatprep.subr.bf16.mxu0 0
        %683 = vmatpush2.bf16.msra.mxu0 0
        %684 = vmatprep.subr.bf16.mxu0 0
        %685 = vmatpush2.bf16.msra.mxu0 0
        %686 = vmatprep.subr.bf16.mxu0 0
        %687 = vmatpush2.bf16.msra.mxu0 0
        %688 = vmatprep.subr.bf16.mxu0 0
        %689 = vmatpush2.bf16.msra.mxu0 0
        %690 = vmatprep.subr.bf16.mxu0 0
        %691 = vmatpush2.bf16.msra.mxu0 0
        %692 = vmatprep.subr.bf16.mxu0 0
        %693 = vmatpush2.bf16.msra.mxu0 0
        %694 = vmatprep.mubr.bf16.mxu0 0
        %695 = vmatmul.mubr.bf16.gmra.mxu0 %v296
        %v696 = vpop.f32.mrf.mxu0
        %v697 = vadd.f32 0.0, %v696
        %v698 = vpop.f32.mrf.mxu0
        %v699 = vpop.f32.mrf.mxu0
        %v700 = vpop.f32.mrf.mxu0
        %701 = vdwg.mxu0
        %v702 = vld [vmem:[%s2] sm:$0xf]
        %v703 = vld [vmem:[%s2 + $0x4] sm:$0xf]
        %v704 = vld [vmem:[%s2 + $0x8] sm:$0xf]
        %v705 = vld [vmem:[%s2 + $0xc] sm:$0xf]
        %v706 = vld [vmem:[%s2 + $0x10] sm:$0xf]
        %v707 = vld [vmem:[%s2 + $0x14] sm:$0xf]
        %v708 = vld [vmem:[%s2 + $0x18] sm:$0xf]
        %v709 = vld [vmem:[%s2 + $0x1c] sm:$0xf]
        %v710 = vld [vmem:[%s2 + $0x20] sm:$0xf]
        %v711 = vld [vmem:[%s2 + $0x24] sm:$0xf]
        %v712 = vld [vmem:[%s2 + $0x28] sm:$0xf]
        %v713 = vld [vmem:[%s2 + $0x2c] sm:$0xf]
        %v714 = vld [vmem:[%s2 + $0x30] sm:$0xf]
        %v715 = vld [vmem:[%s2 + $0x34] sm:$0xf]
        %v716 = vld [vmem:[%s2 + $0x38] sm:$0xf]
        %v717 = vld [vmem:[%s2 + $0x3c] sm:$0xf]
        %v718 = vld [vmem:[%s2 + $0x40] sm:$0xf]
        %v719 = vld [vmem:[%s2 + $0x44] sm:$0xf]
        %v720 = vld [vmem:[%s2 + $0x48] sm:$0xf]
        %v721 = vld [vmem:[%s2 + $0x4c] sm:$0xf]
        %v722 = vld [vmem:[%s2 + $0x50] sm:$0xf]
        %v723 = vld [vmem:[%s2 + $0x54] sm:$0xf]
        %v724 = vld [vmem:[%s2 + $0x58] sm:$0xf]
        %v725 = vld [vmem:[%s2 + $0x5c] sm:$0xf]
        %v726 = vld [vmem:[%s2 + $0x60] sm:$0xf]
        %v727 = vld [vmem:[%s2 + $0x64] sm:$0xf]
        %v728 = vld [vmem:[%s2 + $0x68] sm:$0xf]
        %v729 = vld [vmem:[%s2 + $0x6c] sm:$0xf]
        %v730 = vld [vmem:[%s2 + $0x70] sm:$0xf]
        %v731 = vld [vmem:[%s2 + $0x74] sm:$0xf]
        %v732 = vld [vmem:[%s2 + $0x78] sm:$0xf]
        %v733 = vld [vmem:[%s2 + $0x7c] sm:$0xf]
        %v738 = vunpack.c.l.b16 %v702
        %v739 = vunpack.c.l.b16 %v703
        %v740 = vunpack.c.l.b16 %v704
        %v741 = vunpack.c.l.b16 %v705
        %v742 = vpack.c.b16 %v739, %v738
        %v743 = vpack.c.b16 %v741, %v740
        %746 = vmatprep.subr.bf16.mxu0 0
        %747 = vmatpush1.bf16.msra.mxu0 0
        %748 = vmatprep.subr.bf16.mxu0 0
        %749 = vmatpush1.bf16.msra.mxu0 0
        %750 = vmatprep.subr.bf16.mxu0 0
        %751 = vmatpush1.bf16.msra.mxu0 0
        %752 = vmatprep.subr.bf16.mxu0 0
        %753 = vmatpush1.bf16.msra.mxu0 0
        %754 = vmatprep.subr.bf16.mxu0 0
        %755 = vmatpush1.bf16.msra.mxu0 0
        %756 = vmatprep.subr.bf16.mxu0 0
        %757 = vmatpush1.bf16.msra.mxu0 0
        %758 = vmatprep.subr.bf16.mxu0 0
        %759 = vmatpush1.bf16.msra.mxu0 %v743
        %760 = vmatprep.subr.bf16.mxu0 0
        %761 = vmatpush1.bf16.msra.mxu0 %v742
        %762 = vmatprep.subr.bf16.mxu0 0
        %763 = vmatpush2.bf16.msra.mxu0 0
        %764 = vmatprep.subr.bf16.mxu0 0
        %765 = vmatpush2.bf16.msra.mxu0 0
        %766 = vmatprep.subr.bf16.mxu0 0
        %767 = vmatpush2.bf16.msra.mxu0 0
        %768 = vmatprep.subr.bf16.mxu0 0
        %769 = vmatpush2.bf16.msra.mxu0 0
        %770 = vmatprep.subr.bf16.mxu0 0
        %771 = vmatpush2.bf16.msra.mxu0 0
        %772 = vmatprep.subr.bf16.mxu0 0
        %773 = vmatpush2.bf16.msra.mxu0 0
        %774 = vmatprep.subr.bf16.mxu0 0
        %775 = vmatpush2.bf16.msra.mxu0 0
        %776 = vmatprep.subr.bf16.mxu0 0
        %777 = vmatpush2.bf16.msra.mxu0 0
        %778 = vmatprep.mubr.bf16.mxu0 0
        %779 = vmatmul.mubr.bf16.gmra.mxu0 %v296
        %v780 = vpop.f32.mrf.mxu0
        %v781 = vadd.f32 0.0, %v780
        %v782 = vpop.f32.mrf.mxu0
        %v783 = vpop.f32.mrf.mxu0
        %v784 = vpop.f32.mrf.mxu0
        %785 = vdwg.mxu0
        %v790 = vunpack.c.l.b16 %v706
        %v791 = vunpack.c.l.b16 %v707
        %v792 = vunpack.c.l.b16 %v708
        %v793 = vunpack.c.l.b16 %v709
        %v794 = vpack.c.b16 %v791, %v790
        %v795 = vpack.c.b16 %v793, %v792
        %798 = vmatprep.subr.bf16.mxu0 0
        %799 = vmatpush1.bf16.msra.mxu0 0
        %800 = vmatprep.subr.bf16.mxu0 0
        %801 = vmatpush1.bf16.msra.mxu0 0
        %802 = vmatprep.subr.bf16.mxu0 0
        %803 = vmatpush1.bf16.msra.mxu0 0
        %804 = vmatprep.subr.bf16.mxu0 0
        %805 = vmatpush1.bf16.msra.mxu0 0
        %806 = vmatprep.subr.bf16.mxu0 0
        %807 = vmatpush1.bf16.msra.mxu0 0
        %808 = vmatprep.subr.bf16.mxu0 0
        %809 = vmatpush1.bf16.msra.mxu0 0
        %810 = vmatprep.subr.bf16.mxu0 0
        %811 = vmatpush1.bf16.msra.mxu0 %v795
        %812 = vmatprep.subr.bf16.mxu0 0
        %813 = vmatpush1.bf16.msra.mxu0 %v794
        %814 = vmatprep.subr.bf16.mxu0 0
        %815 = vmatpush2.bf16.msra.mxu0 0
        %816 = vmatprep.subr.bf16.mxu0 0
        %817 = vmatpush2.bf16.msra.mxu0 0
        %818 = vmatprep.subr.bf16.mxu0 0
        %819 = vmatpush2.bf16.msra.mxu0 0
        %820 = vmatprep.subr.bf16.mxu0 0
        %821 = vmatpush2.bf16.msra.mxu0 0
        %822 = vmatprep.subr.bf16.mxu0 0
        %823 = vmatpush2.bf16.msra.mxu0 0
        %824 = vmatprep.subr.bf16.mxu0 0
        %825 = vmatpush2.bf16.msra.mxu0 0
        %826 = vmatprep.subr.bf16.mxu0 0
        %827 = vmatpush2.bf16.msra.mxu0 0
        %828 = vmatprep.subr.bf16.mxu0 0
        %829 = vmatpush2.bf16.msra.mxu0 0
        %830 = vmatprep.mubr.bf16.mxu0 0
        %831 = vmatmul.mubr.bf16.gmra.mxu0 %v296
        %v832 = vpop.f32.mrf.mxu0
        %v833 = vadd.f32 0.0, %v832
        %v834 = vpop.f32.mrf.mxu0
        %v835 = vpop.f32.mrf.mxu0
        %v836 = vpop.f32.mrf.mxu0
        %837 = vdwg.mxu0
        %v842 = vunpack.c.l.b16 %v710
        %v843 = vunpack.c.l.b16 %v711
        %v844 = vunpack.c.l.b16 %v712
        %v845 = vunpack.c.l.b16 %v713
        %v846 = vpack.c.b16 %v843, %v842
        %v847 = vpack.c.b16 %v845, %v844
        %850 = vmatprep.subr.bf16.mxu0 0
        %851 = vmatpush1.bf16.msra.mxu0 0
        %852 = vmatprep.subr.bf16.mxu0 0
        %853 = vmatpush1.bf16.msra.mxu0 0
        %854 = vmatprep.subr.bf16.mxu0 0
        %855 = vmatpush1.bf16.msra.mxu0 0
        %856 = vmatprep.subr.bf16.mxu0 0
        %857 = vmatpush1.bf16.msra.mxu0 0
        %858 = vmatprep.subr.bf16.mxu0 0
        %859 = vmatpush1.bf16.msra.mxu0 0
        %860 = vmatprep.subr.bf16.mxu0 0
        %861 = vmatpush1.bf16.msra.mxu0 0
        %862 = vmatprep.subr.bf16.mxu0 0
        %863 = vmatpush1.bf16.msra.mxu0 %v847
        %864 = vmatprep.subr.bf16.mxu0 0
        %865 = vmatpush1.bf16.msra.mxu0 %v846
        %866 = vmatprep.subr.bf16.mxu0 0
        %867 = vmatpush2.bf16.msra.mxu0 0
        %868 = vmatprep.subr.bf16.mxu0 0
        %869 = vmatpush2.bf16.msra.mxu0 0
        %870 = vmatprep.subr.bf16.mxu0 0
        %871 = vmatpush2.bf16.msra.mxu0 0
        %872 = vmatprep.subr.bf16.mxu0 0
        %873 = vmatpush2.bf16.msra.mxu0 0
        %874 = vmatprep.subr.bf16.mxu0 0
        %875 = vmatpush2.bf16.msra.mxu0 0
        %876 = vmatprep.subr.bf16.mxu0 0
        %877 = vmatpush2.bf16.msra.mxu0 0
        %878 = vmatprep.subr.bf16.mxu0 0
        %879 = vmatpush2.bf16.msra.mxu0 0
        %880 = vmatprep.subr.bf16.mxu0 0
        %881 = vmatpush2.bf16.msra.mxu0 0
        %882 = vmatprep.mubr.bf16.mxu0 0
        %883 = vmatmul.mubr.bf16.gmra.mxu0 %v296
        %v884 = vpop.f32.mrf.mxu0
        %v885 = vadd.f32 0.0, %v884
        %v886 = vpop.f32.mrf.mxu0
        %v887 = vpop.f32.mrf.mxu0
        %v888 = vpop.f32.mrf.mxu0
        %889 = vdwg.mxu0
        %v894 = vunpack.c.l.b16 %v714
        %v895 = vunpack.c.l.b16 %v715
        %v896 = vunpack.c.l.b16 %v716
        %v897 = vunpack.c.l.b16 %v717
        %v898 = vpack.c.b16 %v895, %v894
        %v899 = vpack.c.b16 %v897, %v896
        %902 = vmatprep.subr.bf16.mxu0 0
        %903 = vmatpush1.bf16.msra.mxu0 0
        %904 = vmatprep.subr.bf16.mxu0 0
        %905 = vmatpush1.bf16.msra.mxu0 0
        %906 = vmatprep.subr.bf16.mxu0 0
        %907 = vmatpush1.bf16.msra.mxu0 0
        %908 = vmatprep.subr.bf16.mxu0 0
        %909 = vmatpush1.bf16.msra.mxu0 0
        %910 = vmatprep.subr.bf16.mxu0 0
        %911 = vmatpush1.bf16.msra.mxu0 0
        %912 = vmatprep.subr.bf16.mxu0 0
        %913 = vmatpush1.bf16.msra.mxu0 0
        %914 = vmatprep.subr.bf16.mxu0 0
        %915 = vmatpush1.bf16.msra.mxu0 %v899
        %916 = vmatprep.subr.bf16.mxu0 0
        %917 = vmatpush1.bf16.msra.mxu0 %v898
        %918 = vmatprep.subr.bf16.mxu0 0
        %919 = vmatpush2.bf16.msra.mxu0 0
        %920 = vmatprep.subr.bf16.mxu0 0
        %921 = vmatpush2.bf16.msra.mxu0 0
        %922 = vmatprep.subr.bf16.mxu0 0
        %923 = vmatpush2.bf16.msra.mxu0 0
        %924 = vmatprep.subr.bf16.mxu0 0
        %925 = vmatpush2.bf16.msra.mxu0 0
        %926 = vmatprep.subr.bf16.mxu0 0
        %927 = vmatpush2.bf16.msra.mxu0 0
        %928 = vmatprep.subr.bf16.mxu0 0
        %929 = vmatpush2.bf16.msra.mxu0 0
        %930 = vmatprep.subr.bf16.mxu0 0
        %931 = vmatpush2.bf16.msra.mxu0 0
        %932 = vmatprep.subr.bf16.mxu0 0
        %933 = vmatpush2.bf16.msra.mxu0 0
        %934 = vmatprep.mubr.bf16.mxu0 0
        %935 = vmatmul.mubr.bf16.gmra.mxu0 %v296
        %v936 = vpop.f32.mrf.mxu0
        %v937 = vadd.f32 0.0, %v936
        %v938 = vpop.f32.mrf.mxu0
        %v939 = vpop.f32.mrf.mxu0
        %v940 = vpop.f32.mrf.mxu0
        %941 = vdwg.mxu0
        %v946 = vunpack.c.l.b16 %v718
        %v947 = vunpack.c.l.b16 %v719
        %v948 = vunpack.c.l.b16 %v720
        %v949 = vunpack.c.l.b16 %v721
        %v950 = vpack.c.b16 %v947, %v946
        %v951 = vpack.c.b16 %v949, %v948
        %954 = vmatprep.subr.bf16.mxu0 0
        %955 = vmatpush1.bf16.msra.mxu0 0
        %956 = vmatprep.subr.bf16.mxu0 0
        %957 = vmatpush1.bf16.msra.mxu0 0
        %958 = vmatprep.subr.bf16.mxu0 0
        %959 = vmatpush1.bf16.msra.mxu0 0
        %960 = vmatprep.subr.bf16.mxu0 0
        %961 = vmatpush1.bf16.msra.mxu0 0
        %962 = vmatprep.subr.bf16.mxu0 0
        %963 = vmatpush1.bf16.msra.mxu0 0
        %964 = vmatprep.subr.bf16.mxu0 0
        %965 = vmatpush1.bf16.msra.mxu0 0
        %966 = vmatprep.subr.bf16.mxu0 0
        %967 = vmatpush1.bf16.msra.mxu0 %v951
        %968 = vmatprep.subr.bf16.mxu0 0
        %969 = vmatpush1.bf16.msra.mxu0 %v950
        %970 = vmatprep.subr.bf16.mxu0 0
        %971 = vmatpush2.bf16.msra.mxu0 0
        %972 = vmatprep.subr.bf16.mxu0 0
        %973 = vmatpush2.bf16.msra.mxu0 0
        %974 = vmatprep.subr.bf16.mxu0 0
        %975 = vmatpush2.bf16.msra.mxu0 0
        %976 = vmatprep.subr.bf16.mxu0 0
        %977 = vmatpush2.bf16.msra.mxu0 0
        %978 = vmatprep.subr.bf16.mxu0 0
        %979 = vmatpush2.bf16.msra.mxu0 0
        %980 = vmatprep.subr.bf16.mxu0 0
        %981 = vmatpush2.bf16.msra.mxu0 0
        %982 = vmatprep.subr.bf16.mxu0 0
        %983 = vmatpush2.bf16.msra.mxu0 0
        %984 = vmatprep.subr.bf16.mxu0 0
        %985 = vmatpush2.bf16.msra.mxu0 0
        %986 = vmatprep.mubr.bf16.mxu0 0
        %987 = vmatmul.mubr.bf16.gmra.mxu0 %v296
        %v988 = vpop.f32.mrf.mxu0
        %v989 = vadd.f32 0.0, %v988
        %v990 = vpop.f32.mrf.mxu0
        %v991 = vpop.f32.mrf.mxu0
        %v992 = vpop.f32.mrf.mxu0
        %993 = vdwg.mxu0
        %v998 = vunpack.c.l.b16 %v722
        %v999 = vunpack.c.l.b16 %v723
        %v1000 = vunpack.c.l.b16 %v724
        %v1001 = vunpack.c.l.b16 %v725
        %v1002 = vpack.c.b16 %v999, %v998
        %v1003 = vpack.c.b16 %v1001, %v1000
        %1006 = vmatprep.subr.bf16.mxu0 0
        %1007 = vmatpush1.bf16.msra.mxu0 0
        %1008 = vmatprep.subr.bf16.mxu0 0
        %1009 = vmatpush1.bf16.msra.mxu0 0
        %1010 = vmatprep.subr.bf16.mxu0 0
        %1011 = vmatpush1.bf16.msra.mxu0 0
        %1012 = vmatprep.subr.bf16.mxu0 0
        %1013 = vmatpush1.bf16.msra.mxu0 0
        %1014 = vmatprep.subr.bf16.mxu0 0
        %1015 = vmatpush1.bf16.msra.mxu0 0
        %1016 = vmatprep.subr.bf16.mxu0 0
        %1017 = vmatpush1.bf16.msra.mxu0 0
        %1018 = vmatprep.subr.bf16.mxu0 0
        %1019 = vmatpush1.bf16.msra.mxu0 %v1003
        %1020 = vmatprep.subr.bf16.mxu0 0
        %1021 = vmatpush1.bf16.msra.mxu0 %v1002
        %1022 = vmatprep.subr.bf16.mxu0 0
        %1023 = vmatpush2.bf16.msra.mxu0 0
        %1024 = vmatprep.subr.bf16.mxu0 0
        %1025 = vmatpush2.bf16.msra.mxu0 0
        %1026 = vmatprep.subr.bf16.mxu0 0
        %1027 = vmatpush2.bf16.msra.mxu0 0
        %1028 = vmatprep.subr.bf16.mxu0 0
        %1029 = vmatpush2.bf16.msra.mxu0 0
        %1030 = vmatprep.subr.bf16.mxu0 0
        %1031 = vmatpush2.bf16.msra.mxu0 0
        %1032 = vmatprep.subr.bf16.mxu0 0
        %1033 = vmatpush2.bf16.msra.mxu0 0
        %1034 = vmatprep.subr.bf16.mxu0 0
        %1035 = vmatpush2.bf16.msra.mxu0 0
        %1036 = vmatprep.subr.bf16.mxu0 0
        %1037 = vmatpush2.bf16.msra.mxu0 0
        %1038 = vmatprep.mubr.bf16.mxu0 0
        %1039 = vmatmul.mubr.bf16.gmra.mxu0 %v296
        %v1040 = vpop.f32.mrf.mxu0
        %v1041 = vadd.f32 0.0, %v1040
        %v1042 = vpop.f32.mrf.mxu0
        %v1043 = vpop.f32.mrf.mxu0
        %v1044 = vpop.f32.mrf.mxu0
        %1045 = vdwg.mxu0
        %v1050 = vunpack.c.l.b16 %v726
        %v1051 = vunpack.c.l.b16 %v727
        %v1052 = vunpack.c.l.b16 %v728
        %v1053 = vunpack.c.l.b16 %v729
        %v1054 = vpack.c.b16 %v1051, %v1050
        %v1055 = vpack.c.b16 %v1053, %v1052
        %1058 = vmatprep.subr.bf16.mxu0 0
        %1059 = vmatpush1.bf16.msra.mxu0 0
        %1060 = vmatprep.subr.bf16.mxu0 0
        %1061 = vmatpush1.bf16.msra.mxu0 0
        %1062 = vmatprep.subr.bf16.mxu0 0
        %1063 = vmatpush1.bf16.msra.mxu0 0
        %1064 = vmatprep.subr.bf16.mxu0 0
        %1065 = vmatpush1.bf16.msra.mxu0 0
        %1066 = vmatprep.subr.bf16.mxu0 0
        %1067 = vmatpush1.bf16.msra.mxu0 0
        %1068 = vmatprep.subr.bf16.mxu0 0
        %1069 = vmatpush1.bf16.msra.mxu0 0
        %1070 = vmatprep.subr.bf16.mxu0 0
        %1071 = vmatpush1.bf16.msra.mxu0 %v1055
        %1072 = vmatprep.subr.bf16.mxu0 0
        %1073 = vmatpush1.bf16.msra.mxu0 %v1054
        %1074 = vmatprep.subr.bf16.mxu0 0
        %1075 = vmatpush2.bf16.msra.mxu0 0
        %1076 = vmatprep.subr.bf16.mxu0 0
        %1077 = vmatpush2.bf16.msra.mxu0 0
        %1078 = vmatprep.subr.bf16.mxu0 0
        %1079 = vmatpush2.bf16.msra.mxu0 0
        %1080 = vmatprep.subr.bf16.mxu0 0
        %1081 = vmatpush2.bf16.msra.mxu0 0
        %1082 = vmatprep.subr.bf16.mxu0 0
        %1083 = vmatpush2.bf16.msra.mxu0 0
        %1084 = vmatprep.subr.bf16.mxu0 0
        %1085 = vmatpush2.bf16.msra.mxu0 0
        %1086 = vmatprep.subr.bf16.mxu0 0
        %1087 = vmatpush2.bf16.msra.mxu0 0
        %1088 = vmatprep.subr.bf16.mxu0 0
        %1089 = vmatpush2.bf16.msra.mxu0 0
        %1090 = vmatprep.mubr.bf16.mxu0 0
        %1091 = vmatmul.mubr.bf16.gmra.mxu0 %v296
        %v1092 = vpop.f32.mrf.mxu0
        %v1093 = vadd.f32 0.0, %v1092
        %v1094 = vpop.f32.mrf.mxu0
        %v1095 = vpop.f32.mrf.mxu0
        %v1096 = vpop.f32.mrf.mxu0
        %1097 = vdwg.mxu0
        %v1102 = vunpack.c.l.b16 %v730
        %v1103 = vunpack.c.l.b16 %v731
        %v1104 = vunpack.c.l.b16 %v732
        %v1105 = vunpack.c.l.b16 %v733
        %v1106 = vpack.c.b16 %v1103, %v1102
        %v1107 = vpack.c.b16 %v1105, %v1104
        %1110 = vmatprep.subr.bf16.mxu0 0
        %1111 = vmatpush1.bf16.msra.mxu0 0
        %1112 = vmatprep.subr.bf16.mxu0 0
        %1113 = vmatpush1.bf16.msra.mxu0 0
        %1114 = vmatprep.subr.bf16.mxu0 0
        %1115 = vmatpush1.bf16.msra.mxu0 0
        %1116 = vmatprep.subr.bf16.mxu0 0
        %1117 = vmatpush1.bf16.msra.mxu0 0
        %1118 = vmatprep.subr.bf16.mxu0 0
        %1119 = vmatpush1.bf16.msra.mxu0 0
        %1120 = vmatprep.subr.bf16.mxu0 0
        %1121 = vmatpush1.bf16.msra.mxu0 0
        %1122 = vmatprep.subr.bf16.mxu0 0
        %1123 = vmatpush1.bf16.msra.mxu0 %v1107
        %1124 = vmatprep.subr.bf16.mxu0 0
        %1125 = vmatpush1.bf16.msra.mxu0 %v1106
        %1126 = vmatprep.subr.bf16.mxu0 0
        %1127 = vmatpush2.bf16.msra.mxu0 0
        %1128 = vmatprep.subr.bf16.mxu0 0
        %1129 = vmatpush2.bf16.msra.mxu0 0
        %1130 = vmatprep.subr.bf16.mxu0 0
        %1131 = vmatpush2.bf16.msra.mxu0 0
        %1132 = vmatprep.subr.bf16.mxu0 0
        %1133 = vmatpush2.bf16.msra.mxu0 0
        %1134 = vmatprep.subr.bf16.mxu0 0
        %1135 = vmatpush2.bf16.msra.mxu0 0
        %1136 = vmatprep.subr.bf16.mxu0 0
        %1137 = vmatpush2.bf16.msra.mxu0 0
        %1138 = vmatprep.subr.bf16.mxu0 0
        %1139 = vmatpush2.bf16.msra.mxu0 0
        %1140 = vmatprep.subr.bf16.mxu0 0
        %1141 = vmatpush2.bf16.msra.mxu0 0
        %1142 = vmatprep.mubr.bf16.mxu0 0
        %1143 = vmatmul.mubr.bf16.gmra.mxu0 %v296
        %v1144 = vpop.f32.mrf.mxu0
        %v1145 = vadd.f32 0.0, %v1144
        %v1146 = vpop.f32.mrf.mxu0
        %v1147 = vpop.f32.mrf.mxu0
        %v1148 = vpop.f32.mrf.mxu0
        %1149 = vdwg.mxu0
        %v1150 = vld [vmem:[%s3] sm:$0xf]
        %v1151 = vld [vmem:[%s3 + $0x4] sm:$0xf]
        %v1152 = vld [vmem:[%s3 + $0x8] sm:$0xf]
        %v1153 = vld [vmem:[%s3 + $0xc] sm:$0xf]
        %v1154 = vld [vmem:[%s3 + $0x10] sm:$0xf]
        %v1155 = vld [vmem:[%s3 + $0x14] sm:$0xf]
        %v1156 = vld [vmem:[%s3 + $0x18] sm:$0xf]
        %v1157 = vld [vmem:[%s3 + $0x1c] sm:$0xf]
        %v1158 = vld [vmem:[%s3 + $0x20] sm:$0xf]
        %v1159 = vld [vmem:[%s3 + $0x24] sm:$0xf]
        %v1160 = vld [vmem:[%s3 + $0x28] sm:$0xf]
        %v1161 = vld [vmem:[%s3 + $0x2c] sm:$0xf]
        %v1162 = vld [vmem:[%s3 + $0x30] sm:$0xf]
        %v1163 = vld [vmem:[%s3 + $0x34] sm:$0xf]
        %v1164 = vld [vmem:[%s3 + $0x38] sm:$0xf]
        %v1165 = vld [vmem:[%s3 + $0x3c] sm:$0xf]
        %v1166 = vld [vmem:[%s3 + $0x40] sm:$0xf]
        %v1167 = vld [vmem:[%s3 + $0x44] sm:$0xf]
        %v1168 = vld [vmem:[%s3 + $0x48] sm:$0xf]
        %v1169 = vld [vmem:[%s3 + $0x4c] sm:$0xf]
        %v1170 = vld [vmem:[%s3 + $0x50] sm:$0xf]
        %v1171 = vld [vmem:[%s3 + $0x54] sm:$0xf]
        %v1172 = vld [vmem:[%s3 + $0x58] sm:$0xf]
        %v1173 = vld [vmem:[%s3 + $0x5c] sm:$0xf]
        %v1174 = vld [vmem:[%s3 + $0x60] sm:$0xf]
        %v1175 = vld [vmem:[%s3 + $0x64] sm:$0xf]
        %v1176 = vld [vmem:[%s3 + $0x68] sm:$0xf]
        %v1177 = vld [vmem:[%s3 + $0x6c] sm:$0xf]
        %v1178 = vld [vmem:[%s3 + $0x70] sm:$0xf]
        %v1179 = vld [vmem:[%s3 + $0x74] sm:$0xf]
        %v1180 = vld [vmem:[%s3 + $0x78] sm:$0xf]
        %v1181 = vld [vmem:[%s3 + $0x7c] sm:$0xf]
        %v1186 = vunpack.c.l.b16 %v1150
        %v1187 = vunpack.c.l.b16 %v1151
        %v1188 = vunpack.c.l.b16 %v1152
        %v1189 = vunpack.c.l.b16 %v1153
        %v1190 = vpack.c.b16 %v1187, %v1186
        %v1191 = vpack.c.b16 %v1189, %v1188
        %1194 = vmatprep.subr.bf16.mxu0 0
        %1195 = vmatpush1.bf16.msra.mxu0 0
        %1196 = vmatprep.subr.bf16.mxu0 0
        %1197 = vmatpush1.bf16.msra.mxu0 0
        %1198 = vmatprep.subr.bf16.mxu0 0
        %1199 = vmatpush1.bf16.msra.mxu0 0
        %1200 = vmatprep.subr.bf16.mxu0 0
        %1201 = vmatpush1.bf16.msra.mxu0 0
        %1202 = vmatprep.subr.bf16.mxu0 0
        %1203 = vmatpush1.bf16.msra.mxu0 0
        %1204 = vmatprep.subr.bf16.mxu0 0
        %1205 = vmatpush1.bf16.msra.mxu0 0
        %1206 = vmatprep.subr.bf16.mxu0 0
        %1207 = vmatpush1.bf16.msra.mxu0 %v1191
        %1208 = vmatprep.subr.bf16.mxu0 0
        %1209 = vmatpush1.bf16.msra.mxu0 %v1190
        %1210 = vmatprep.subr.bf16.mxu0 0
        %1211 = vmatpush2.bf16.msra.mxu0 0
        %1212 = vmatprep.subr.bf16.mxu0 0
        %1213 = vmatpush2.bf16.msra.mxu0 0
        %1214 = vmatprep.subr.bf16.mxu0 0
        %1215 = vmatpush2.bf16.msra.mxu0 0
        %1216 = vmatprep.subr.bf16.mxu0 0
        %1217 = vmatpush2.bf16.msra.mxu0 0
        %1218 = vmatprep.subr.bf16.mxu0 0
        %1219 = vmatpush2.bf16.msra.mxu0 0
        %1220 = vmatprep.subr.bf16.mxu0 0
        %1221 = vmatpush2.bf16.msra.mxu0 0
        %1222 = vmatprep.subr.bf16.mxu0 0
        %1223 = vmatpush2.bf16.msra.mxu0 0
        %1224 = vmatprep.subr.bf16.mxu0 0
        %1225 = vmatpush2.bf16.msra.mxu0 0
        %1226 = vmatprep.mubr.bf16.mxu0 0
        %1227 = vmatmul.mubr.bf16.gmra.mxu0 %v296
        %v1228 = vpop.f32.mrf.mxu0
        %v1229 = vadd.f32 0.0, %v1228
        %v1230 = vpop.f32.mrf.mxu0
        %v1231 = vpop.f32.mrf.mxu0
        %v1232 = vpop.f32.mrf.mxu0
        %1233 = vdwg.mxu0
        %v1238 = vunpack.c.l.b16 %v1154
        %v1239 = vunpack.c.l.b16 %v1155
        %v1240 = vunpack.c.l.b16 %v1156
        %v1241 = vunpack.c.l.b16 %v1157
        %v1242 = vpack.c.b16 %v1239, %v1238
        %v1243 = vpack.c.b16 %v1241, %v1240
        %1246 = vmatprep.subr.bf16.mxu0 0
        %1247 = vmatpush1.bf16.msra.mxu0 0
        %1248 = vmatprep.subr.bf16.mxu0 0
        %1249 = vmatpush1.bf16.msra.mxu0 0
        %1250 = vmatprep.subr.bf16.mxu0 0
        %1251 = vmatpush1.bf16.msra.mxu0 0
        %1252 = vmatprep.subr.bf16.mxu0 0
        %1253 = vmatpush1.bf16.msra.mxu0 0
        %1254 = vmatprep.subr.bf16.mxu0 0
        %1255 = vmatpush1.bf16.msra.mxu0 0
        %1256 = vmatprep.subr.bf16.mxu0 0
        %1257 = vmatpush1.bf16.msra.mxu0 0
        %1258 = vmatprep.subr.bf16.mxu0 0
        %1259 = vmatpush1.bf16.msra.mxu0 %v1243
        %1260 = vmatprep.subr.bf16.mxu0 0
        %1261 = vmatpush1.bf16.msra.mxu0 %v1242
        %1262 = vmatprep.subr.bf16.mxu0 0
        %1263 = vmatpush2.bf16.msra.mxu0 0
        %1264 = vmatprep.subr.bf16.mxu0 0
        %1265 = vmatpush2.bf16.msra.mxu0 0
        %1266 = vmatprep.subr.bf16.mxu0 0
        %1267 = vmatpush2.bf16.msra.mxu0 0
        %1268 = vmatprep.subr.bf16.mxu0 0
        %1269 = vmatpush2.bf16.msra.mxu0 0
        %1270 = vmatprep.subr.bf16.mxu0 0
        %1271 = vmatpush2.bf16.msra.mxu0 0
        %1272 = vmatprep.subr.bf16.mxu0 0
        %1273 = vmatpush2.bf16.msra.mxu0 0
        %1274 = vmatprep.subr.bf16.mxu0 0
        %1275 = vmatpush2.bf16.msra.mxu0 0
        %1276 = vmatprep.subr.bf16.mxu0 0
        %1277 = vmatpush2.bf16.msra.mxu0 0
        %1278 = vmatprep.mubr.bf16.mxu0 0
        %1279 = vmatmul.mubr.bf16.gmra.mxu0 %v296
        %v1280 = vpop.f32.mrf.mxu0
        %v1281 = vadd.f32 0.0, %v1280
        %v1282 = vpop.f32.mrf.mxu0
        %v1283 = vpop.f32.mrf.mxu0
        %v1284 = vpop.f32.mrf.mxu0
        %1285 = vdwg.mxu0
        %v1290 = vunpack.c.l.b16 %v1158
        %v1291 = vunpack.c.l.b16 %v1159
        %v1292 = vunpack.c.l.b16 %v1160
        %v1293 = vunpack.c.l.b16 %v1161
        %v1294 = vpack.c.b16 %v1291, %v1290
        %v1295 = vpack.c.b16 %v1293, %v1292
        %1298 = vmatprep.subr.bf16.mxu0 0
        %1299 = vmatpush1.bf16.msra.mxu0 0
        %1300 = vmatprep.subr.bf16.mxu0 0
        %1301 = vmatpush1.bf16.msra.mxu0 0
        %1302 = vmatprep.subr.bf16.mxu0 0
        %1303 = vmatpush1.bf16.msra.mxu0 0
        %1304 = vmatprep.subr.bf16.mxu0 0
        %1305 = vmatpush1.bf16.msra.mxu0 0
        %1306 = vmatprep.subr.bf16.mxu0 0
        %1307 = vmatpush1.bf16.msra.mxu0 0
        %1308 = vmatprep.subr.bf16.mxu0 0
        %1309 = vmatpush1.bf16.msra.mxu0 0
        %1310 = vmatprep.subr.bf16.mxu0 0
        %1311 = vmatpush1.bf16.msra.mxu0 %v1295
        %1312 = vmatprep.subr.bf16.mxu0 0
        %1313 = vmatpush1.bf16.msra.mxu0 %v1294
        %1314 = vmatprep.subr.bf16.mxu0 0
        %1315 = vmatpush2.bf16.msra.mxu0 0
        %1316 = vmatprep.subr.bf16.mxu0 0
        %1317 = vmatpush2.bf16.msra.mxu0 0
        %1318 = vmatprep.subr.bf16.mxu0 0
        %1319 = vmatpush2.bf16.msra.mxu0 0
        %1320 = vmatprep.subr.bf16.mxu0 0
        %1321 = vmatpush2.bf16.msra.mxu0 0
        %1322 = vmatprep.subr.bf16.mxu0 0
        %1323 = vmatpush2.bf16.msra.mxu0 0
        %1324 = vmatprep.subr.bf16.mxu0 0
        %1325 = vmatpush2.bf16.msra.mxu0 0
        %1326 = vmatprep.subr.bf16.mxu0 0
        %1327 = vmatpush2.bf16.msra.mxu0 0
        %1328 = vmatprep.subr.bf16.mxu0 0
        %1329 = vmatpush2.bf16.msra.mxu0 0
        %1330 = vmatprep.mubr.bf16.mxu0 0
        %1331 = vmatmul.mubr.bf16.gmra.mxu0 %v296
        %v1332 = vpop.f32.mrf.mxu0
        %v1333 = vadd.f32 0.0, %v1332
        %v1334 = vpop.f32.mrf.mxu0
        %v1335 = vpop.f32.mrf.mxu0
        %v1336 = vpop.f32.mrf.mxu0
        %1337 = vdwg.mxu0
        %v1342 = vunpack.c.l.b16 %v1162
        %v1343 = vunpack.c.l.b16 %v1163
        %v1344 = vunpack.c.l.b16 %v1164
        %v1345 = vunpack.c.l.b16 %v1165
        %v1346 = vpack.c.b16 %v1343, %v1342
        %v1347 = vpack.c.b16 %v1345, %v1344
        %1350 = vmatprep.subr.bf16.mxu0 0
        %1351 = vmatpush1.bf16.msra.mxu0 0
        %1352 = vmatprep.subr.bf16.mxu0 0
        %1353 = vmatpush1.bf16.msra.mxu0 0
        %1354 = vmatprep.subr.bf16.mxu0 0
        %1355 = vmatpush1.bf16.msra.mxu0 0
        %1356 = vmatprep.subr.bf16.mxu0 0
        %1357 = vmatpush1.bf16.msra.mxu0 0
        %1358 = vmatprep.subr.bf16.mxu0 0
        %1359 = vmatpush1.bf16.msra.mxu0 0
        %1360 = vmatprep.subr.bf16.mxu0 0
        %1361 = vmatpush1.bf16.msra.mxu0 0
        %1362 = vmatprep.subr.bf16.mxu0 0
        %1363 = vmatpush1.bf16.msra.mxu0 %v1347
        %1364 = vmatprep.subr.bf16.mxu0 0
        %1365 = vmatpush1.bf16.msra.mxu0 %v1346
        %1366 = vmatprep.subr.bf16.mxu0 0
        %1367 = vmatpush2.bf16.msra.mxu0 0
        %1368 = vmatprep.subr.bf16.mxu0 0
        %1369 = vmatpush2.bf16.msra.mxu0 0
        %1370 = vmatprep.subr.bf16.mxu0 0
        %1371 = vmatpush2.bf16.msra.mxu0 0
        %1372 = vmatprep.subr.bf16.mxu0 0
        %1373 = vmatpush2.bf16.msra.mxu0 0
        %1374 = vmatprep.subr.bf16.mxu0 0
        %1375 = vmatpush2.bf16.msra.mxu0 0
        %1376 = vmatprep.subr.bf16.mxu0 0
        %1377 = vmatpush2.bf16.msra.mxu0 0
        %1378 = vmatprep.subr.bf16.mxu0 0
        %1379 = vmatpush2.bf16.msra.mxu0 0
        %1380 = vmatprep.subr.bf16.mxu0 0
        %1381 = vmatpush2.bf16.msra.mxu0 0
        %1382 = vmatprep.mubr.bf16.mxu0 0
        %1383 = vmatmul.mubr.bf16.gmra.mxu0 %v296
        %v1384 = vpop.f32.mrf.mxu0
        %v1385 = vadd.f32 0.0, %v1384
        %v1386 = vpop.f32.mrf.mxu0
        %v1387 = vpop.f32.mrf.mxu0
        %v1388 = vpop.f32.mrf.mxu0
        %1389 = vdwg.mxu0
        %v1394 = vunpack.c.l.b16 %v1166
        %v1395 = vunpack.c.l.b16 %v1167
        %v1396 = vunpack.c.l.b16 %v1168
        %v1397 = vunpack.c.l.b16 %v1169
        %v1398 = vpack.c.b16 %v1395, %v1394
        %v1399 = vpack.c.b16 %v1397, %v1396
        %1402 = vmatprep.subr.bf16.mxu0 0
        %1403 = vmatpush1.bf16.msra.mxu0 0
        %1404 = vmatprep.subr.bf16.mxu0 0
        %1405 = vmatpush1.bf16.msra.mxu0 0
        %1406 = vmatprep.subr.bf16.mxu0 0
        %1407 = vmatpush1.bf16.msra.mxu0 0
        %1408 = vmatprep.subr.bf16.mxu0 0
        %1409 = vmatpush1.bf16.msra.mxu0 0
        %1410 = vmatprep.subr.bf16.mxu0 0
        %1411 = vmatpush1.bf16.msra.mxu0 0
        %1412 = vmatprep.subr.bf16.mxu0 0
        %1413 = vmatpush1.bf16.msra.mxu0 0
        %1414 = vmatprep.subr.bf16.mxu0 0
        %1415 = vmatpush1.bf16.msra.mxu0 %v1399
        %1416 = vmatprep.subr.bf16.mxu0 0
        %1417 = vmatpush1.bf16.msra.mxu0 %v1398
        %1418 = vmatprep.subr.bf16.mxu0 0
        %1419 = vmatpush2.bf16.msra.mxu0 0
        %1420 = vmatprep.subr.bf16.mxu0 0
        %1421 = vmatpush2.bf16.msra.mxu0 0
        %1422 = vmatprep.subr.bf16.mxu0 0
        %1423 = vmatpush2.bf16.msra.mxu0 0
        %1424 = vmatprep.subr.bf16.mxu0 0
        %1425 = vmatpush2.bf16.msra.mxu0 0
        %1426 = vmatprep.subr.bf16.mxu0 0
        %1427 = vmatpush2.bf16.msra.mxu0 0
        %1428 = vmatprep.subr.bf16.mxu0 0
        %1429 = vmatpush2.bf16.msra.mxu0 0
        %1430 = vmatprep.subr.bf16.mxu0 0
        %1431 = vmatpush2.bf16.msra.mxu0 0
        %1432 = vmatprep.subr.bf16.mxu0 0
        %1433 = vmatpush2.bf16.msra.mxu0 0
        %1434 = vmatprep.mubr.bf16.mxu0 0
        %1435 = vmatmul.mubr.bf16.gmra.mxu0 %v296
        %v1436 = vpop.f32.mrf.mxu0
        %v1437 = vadd.f32 0.0, %v1436
        %v1438 = vpop.f32.mrf.mxu0
        %v1439 = vpop.f32.mrf.mxu0
        %v1440 = vpop.f32.mrf.mxu0
        %1441 = vdwg.mxu0
        %v1446 = vunpack.c.l.b16 %v1170
        %v1447 = vunpack.c.l.b16 %v1171
        %v1448 = vunpack.c.l.b16 %v1172
        %v1449 = vunpack.c.l.b16 %v1173
        %v1450 = vpack.c.b16 %v1447, %v1446
        %v1451 = vpack.c.b16 %v1449, %v1448
        %1454 = vmatprep.subr.bf16.mxu0 0
        %1455 = vmatpush1.bf16.msra.mxu0 0
        %1456 = vmatprep.subr.bf16.mxu0 0
        %1457 = vmatpush1.bf16.msra.mxu0 0
        %1458 = vmatprep.subr.bf16.mxu0 0
        %1459 = vmatpush1.bf16.msra.mxu0 0
        %1460 = vmatprep.subr.bf16.mxu0 0
        %1461 = vmatpush1.bf16.msra.mxu0 0
        %1462 = vmatprep.subr.bf16.mxu0 0
        %1463 = vmatpush1.bf16.msra.mxu0 0
        %1464 = vmatprep.subr.bf16.mxu0 0
        %1465 = vmatpush1.bf16.msra.mxu0 0
        %1466 = vmatprep.subr.bf16.mxu0 0
        %1467 = vmatpush1.bf16.msra.mxu0 %v1451
        %1468 = vmatprep.subr.bf16.mxu0 0
        %1469 = vmatpush1.bf16.msra.mxu0 %v1450
        %1470 = vmatprep.subr.bf16.mxu0 0
        %1471 = vmatpush2.bf16.msra.mxu0 0
        %1472 = vmatprep.subr.bf16.mxu0 0
        %1473 = vmatpush2.bf16.msra.mxu0 0
        %1474 = vmatprep.subr.bf16.mxu0 0
        %1475 = vmatpush2.bf16.msra.mxu0 0
        %1476 = vmatprep.subr.bf16.mxu0 0
        %1477 = vmatpush2.bf16.msra.mxu0 0
        %1478 = vmatprep.subr.bf16.mxu0 0
        %1479 = vmatpush2.bf16.msra.mxu0 0
        %1480 = vmatprep.subr.bf16.mxu0 0
        %1481 = vmatpush2.bf16.msra.mxu0 0
        %1482 = vmatprep.subr.bf16.mxu0 0
        %1483 = vmatpush2.bf16.msra.mxu0 0
        %1484 = vmatprep.subr.bf16.mxu0 0
        %1485 = vmatpush2.bf16.msra.mxu0 0
        %1486 = vmatprep.mubr.bf16.mxu0 0
        %1487 = vmatmul.mubr.bf16.gmra.mxu0 %v296
        %v1488 = vpop.f32.mrf.mxu0
        %v1489 = vadd.f32 0.0, %v1488
        %v1490 = vpop.f32.mrf.mxu0
        %v1491 = vpop.f32.mrf.mxu0
        %v1492 = vpop.f32.mrf.mxu0
        %1493 = vdwg.mxu0
        %v1498 = vunpack.c.l.b16 %v1174
        %v1499 = vunpack.c.l.b16 %v1175
        %v1500 = vunpack.c.l.b16 %v1176
        %v1501 = vunpack.c.l.b16 %v1177
        %v1502 = vpack.c.b16 %v1499, %v1498
        %v1503 = vpack.c.b16 %v1501, %v1500
        %1506 = vmatprep.subr.bf16.mxu0 0
        %1507 = vmatpush1.bf16.msra.mxu0 0
        %1508 = vmatprep.subr.bf16.mxu0 0
        %1509 = vmatpush1.bf16.msra.mxu0 0
        %1510 = vmatprep.subr.bf16.mxu0 0
        %1511 = vmatpush1.bf16.msra.mxu0 0
        %1512 = vmatprep.subr.bf16.mxu0 0
        %1513 = vmatpush1.bf16.msra.mxu0 0
        %1514 = vmatprep.subr.bf16.mxu0 0
        %1515 = vmatpush1.bf16.msra.mxu0 0
        %1516 = vmatprep.subr.bf16.mxu0 0
        %1517 = vmatpush1.bf16.msra.mxu0 0
        %1518 = vmatprep.subr.bf16.mxu0 0
        %1519 = vmatpush1.bf16.msra.mxu0 %v1503
        %1520 = vmatprep.subr.bf16.mxu0 0
        %1521 = vmatpush1.bf16.msra.mxu0 %v1502
        %1522 = vmatprep.subr.bf16.mxu0 0
        %1523 = vmatpush2.bf16.msra.mxu0 0
        %1524 = vmatprep.subr.bf16.mxu0 0
        %1525 = vmatpush2.bf16.msra.mxu0 0
        %1526 = vmatprep.subr.bf16.mxu0 0
        %1527 = vmatpush2.bf16.msra.mxu0 0
        %1528 = vmatprep.subr.bf16.mxu0 0
        %1529 = vmatpush2.bf16.msra.mxu0 0
        %1530 = vmatprep.subr.bf16.mxu0 0
        %1531 = vmatpush2.bf16.msra.mxu0 0
        %1532 = vmatprep.subr.bf16.mxu0 0
        %1533 = vmatpush2.bf16.msra.mxu0 0
        %1534 = vmatprep.subr.bf16.mxu0 0
        %1535 = vmatpush2.bf16.msra.mxu0 0
        %1536 = vmatprep.subr.bf16.mxu0 0
        %1537 = vmatpush2.bf16.msra.mxu0 0
        %1538 = vmatprep.mubr.bf16.mxu0 0
        %1539 = vmatmul.mubr.bf16.gmra.mxu0 %v296
        %v1540 = vpop.f32.mrf.mxu0
        %v1541 = vadd.f32 0.0, %v1540
        %v1542 = vpop.f32.mrf.mxu0
        %v1543 = vpop.f32.mrf.mxu0
        %v1544 = vpop.f32.mrf.mxu0
        %1545 = vdwg.mxu0
        %v1550 = vunpack.c.l.b16 %v1178
        %v1551 = vunpack.c.l.b16 %v1179
        %v1552 = vunpack.c.l.b16 %v1180
        %v1553 = vunpack.c.l.b16 %v1181
        %v1554 = vpack.c.b16 %v1551, %v1550
        %v1555 = vpack.c.b16 %v1553, %v1552
        %1558 = vmatprep.subr.bf16.mxu0 0
        %1559 = vmatpush1.bf16.msra.mxu0 0
        %1560 = vmatprep.subr.bf16.mxu0 0
        %1561 = vmatpush1.bf16.msra.mxu0 0
        %1562 = vmatprep.subr.bf16.mxu0 0
        %1563 = vmatpush1.bf16.msra.mxu0 0
        %1564 = vmatprep.subr.bf16.mxu0 0
        %1565 = vmatpush1.bf16.msra.mxu0 0
        %1566 = vmatprep.subr.bf16.mxu0 0
        %1567 = vmatpush1.bf16.msra.mxu0 0
        %1568 = vmatprep.subr.bf16.mxu0 0
        %1569 = vmatpush1.bf16.msra.mxu0 0
        %1570 = vmatprep.subr.bf16.mxu0 0
        %1571 = vmatpush1.bf16.msra.mxu0 %v1555
        %1572 = vmatprep.subr.bf16.mxu0 0
        %1573 = vmatpush1.bf16.msra.mxu0 %v1554
        %1574 = vmatprep.subr.bf16.mxu0 0
        %1575 = vmatpush2.bf16.msra.mxu0 0
        %1576 = vmatprep.subr.bf16.mxu0 0
        %1577 = vmatpush2.bf16.msra.mxu0 0
        %1578 = vmatprep.subr.bf16.mxu0 0
        %1579 = vmatpush2.bf16.msra.mxu0 0
        %1580 = vmatprep.subr.bf16.mxu0 0
        %1581 = vmatpush2.bf16.msra.mxu0 0
        %1582 = vmatprep.subr.bf16.mxu0 0
        %1583 = vmatpush2.bf16.msra.mxu0 0
        %1584 = vmatprep.subr.bf16.mxu0 0
        %1585 = vmatpush2.bf16.msra.mxu0 0
        %1586 = vmatprep.subr.bf16.mxu0 0
        %1587 = vmatpush2.bf16.msra.mxu0 0
        %1588 = vmatprep.subr.bf16.mxu0 0
        %1589 = vmatpush2.bf16.msra.mxu0 0
        %1590 = vmatprep.mubr.bf16.mxu0 0
        %1591 = vmatmul.mubr.bf16.gmra.mxu0 %v296
        %v1592 = vpop.f32.mrf.mxu0
        %v1593 = vadd.f32 0.0, %v1592
        %v1594 = vpop.f32.mrf.mxu0
        %v1595 = vpop.f32.mrf.mxu0
        %v1596 = vpop.f32.mrf.mxu0
        %1597 = vdwg.mxu0
        %v1598 = vmul.f32 %v333, 0.5
        %v1599 = vmul.f32 %v385, 0.5
        %v1600 = vmul.f32 %v437, 0.5
        %v1601 = vmul.f32 %v489, 0.5
        %v1602 = vmul.f32 %v541, 0.5
        %v1603 = vmul.f32 %v593, 0.5
        %v1604 = vmul.f32 %v645, 0.5
        %v1605 = vmul.f32 %v697, 0.5
        %v1606 = vpack.c.bf16 %v1598, %v1598
        %v1607 = vpack.c.bf16 %v1599, %v1599
        %v1608 = vpack.c.bf16 %v1600, %v1600
        %v1609 = vpack.c.bf16 %v1601, %v1601
        %v1610 = vpack.c.bf16 %v1602, %v1602
        %v1611 = vpack.c.bf16 %v1603, %v1603
        %v1612 = vpack.c.bf16 %v1604, %v1604
        %v1613 = vpack.c.bf16 %v1605, %v1605
        %v1614 = vpack.c.bf16 %v781, %v781
        %v1615 = vpack.c.bf16 %v833, %v833
        %v1616 = vpack.c.bf16 %v885, %v885
        %v1617 = vpack.c.bf16 %v937, %v937
        %v1618 = vpack.c.bf16 %v989, %v989
        %v1619 = vpack.c.bf16 %v1041, %v1041
        %v1620 = vpack.c.bf16 %v1093, %v1093
        %v1621 = vpack.c.bf16 %v1145, %v1145
        %v1622 = vpack.c.bf16 %v1229, %v1229
        %v1623 = vpack.c.bf16 %v1281, %v1281
        %v1624 = vpack.c.bf16 %v1333, %v1333
        %v1625 = vpack.c.bf16 %v1385, %v1385
        %v1626 = vpack.c.bf16 %v1437, %v1437
        %v1627 = vpack.c.bf16 %v1489, %v1489
        %v1628 = vpack.c.bf16 %v1541, %v1541
        %v1629 = vpack.c.bf16 %v1593, %v1593
        %vm1630 = vcmask 31744
        %v1632 = vsel %vm1630, %v1606, 0
        %v1635 = vsel %vm1630, %v1614, 0
        %1637 = vmatprep.subr.bf16.mxu0 0
        %1638 = vmatpush1.bf16.xpose.msra.mxu0 0
        %1639 = vmatprep.subr.bf16.mxu0 0
        %1640 = vmatpush1.bf16.xpose.msra.mxu0 0
        %1641 = vmatprep.subr.bf16.mxu0 0
        %1642 = vmatpush1.bf16.xpose.msra.mxu0 0
        %1643 = vmatprep.subr.bf16.mxu0 0
        %1644 = vmatpush1.bf16.xpose.msra.mxu0 0
        %1645 = vmatprep.subr.bf16.mxu0 0
        %1646 = vmatpush1.bf16.xpose.msra.mxu0 0
        %1647 = vmatprep.subr.bf16.mxu0 0
        %1648 = vmatpush1.bf16.xpose.msra.mxu0 0
        %1649 = vmatprep.subr.bf16.mxu0 0
        %1650 = vmatpush1.bf16.xpose.msra.mxu0 0
        %1651 = vmatprep.subr.bf16.mxu0 0
        %1652 = vmatpush1.bf16.xpose.msra.mxu0 %v1635
        %1653 = vmatprep.subr.bf16.mxu0 0
        %1654 = vmatpush2.bf16.xpose.msra.mxu0 0
        %1655 = vmatprep.subr.bf16.mxu0 0
        %1656 = vmatpush2.bf16.xpose.msra.mxu0 0
        %1657 = vmatprep.subr.bf16.mxu0 0
        %1658 = vmatpush2.bf16.xpose.msra.mxu0 0
        %1659 = vmatprep.subr.bf16.mxu0 0
        %1660 = vmatpush2.bf16.xpose.msra.mxu0 0
        %1661 = vmatprep.subr.bf16.mxu0 0
        %1662 = vmatpush2.bf16.xpose.msra.mxu0 0
        %1663 = vmatprep.subr.bf16.mxu0 0
        %1664 = vmatpush2.bf16.xpose.msra.mxu0 0
        %1665 = vmatprep.subr.bf16.mxu0 0
        %1666 = vmatpush2.bf16.xpose.msra.mxu0 0
        %1667 = vmatprep.subr.bf16.mxu0 0
        %1668 = vmatpush2.bf16.xpose.msra.mxu0 0
        %1669 = vmatprep.mubr.bf16.mxu0 0
        %1670 = vmatmul.mubr.bf16.gmra.mxu0 %v1632
        %v1671 = vpop.f32.mrf.mxu0
        %v1672 = vadd.f32 0.0, %v1671
        %v1673 = vpop.f32.mrf.mxu0
        %v1674 = vpop.f32.mrf.mxu0
        %v1675 = vpop.f32.mrf.mxu0
        %1676 = vdwg.mxu0
        %v1678 = vsel %vm1630, %v1607, 0
        %v1681 = vsel %vm1630, %v1615, 0
        %1683 = vmatprep.subr.bf16.mxu0 0
        %1684 = vmatpush1.bf16.xpose.msra.mxu0 0
        %1685 = vmatprep.subr.bf16.mxu0 0
        %1686 = vmatpush1.bf16.xpose.msra.mxu0 0
        %1687 = vmatprep.subr.bf16.mxu0 0
        %1688 = vmatpush1.bf16.xpose.msra.mxu0 0
        %1689 = vmatprep.subr.bf16.mxu0 0
        %1690 = vmatpush1.bf16.xpose.msra.mxu0 0
        %1691 = vmatprep.subr.bf16.mxu0 0
        %1692 = vmatpush1.bf16.xpose.msra.mxu0 0
        %1693 = vmatprep.subr.bf16.mxu0 0
        %1694 = vmatpush1.bf16.xpose.msra.mxu0 0
        %1695 = vmatprep.subr.bf16.mxu0 0
        %1696 = vmatpush1.bf16.xpose.msra.mxu0 0
        %1697 = vmatprep.subr.bf16.mxu0 0
        %1698 = vmatpush1.bf16.xpose.msra.mxu0 %v1681
        %1699 = vmatprep.subr.bf16.mxu0 0
        %1700 = vmatpush2.bf16.xpose.msra.mxu0 0
        %1701 = vmatprep.subr.bf16.mxu0 0
        %1702 = vmatpush2.bf16.xpose.msra.mxu0 0
        %1703 = vmatprep.subr.bf16.mxu0 0
        %1704 = vmatpush2.bf16.xpose.msra.mxu0 0
        %1705 = vmatprep.subr.bf16.mxu0 0
        %1706 = vmatpush2.bf16.xpose.msra.mxu0 0
        %1707 = vmatprep.subr.bf16.mxu0 0
        %1708 = vmatpush2.bf16.xpose.msra.mxu0 0
        %1709 = vmatprep.subr.bf16.mxu0 0
        %1710 = vmatpush2.bf16.xpose.msra.mxu0 0
        %1711 = vmatprep.subr.bf16.mxu0 0
        %1712 = vmatpush2.bf16.xpose.msra.mxu0 0
        %1713 = vmatprep.subr.bf16.mxu0 0
        %1714 = vmatpush2.bf16.xpose.msra.mxu0 0
        %1715 = vmatprep.mubr.bf16.mxu0 0
        %1716 = vmatmul.mubr.bf16.gmra.mxu0 %v1678
        %v1717 = vpop.f32.mrf.mxu0
        %v1718 = vadd.f32 0.0, %v1717
        %v1719 = vpop.f32.mrf.mxu0
        %v1720 = vpop.f32.mrf.mxu0
        %v1721 = vpop.f32.mrf.mxu0
        %1722 = vdwg.mxu0
        %v1724 = vsel %vm1630, %v1608, 0
        %v1727 = vsel %vm1630, %v1616, 0
        %1729 = vmatprep.subr.bf16.mxu0 0
        %1730 = vmatpush1.bf16.xpose.msra.mxu0 0
        %1731 = vmatprep.subr.bf16.mxu0 0
        %1732 = vmatpush1.bf16.xpose.msra.mxu0 0
        %1733 = vmatprep.subr.bf16.mxu0 0
        %1734 = vmatpush1.bf16.xpose.msra.mxu0 0
        %1735 = vmatprep.subr.bf16.mxu0 0
        %1736 = vmatpush1.bf16.xpose.msra.mxu0 0
        %1737 = vmatprep.subr.bf16.mxu0 0
        %1738 = vmatpush1.bf16.xpose.msra.mxu0 0
        %1739 = vmatprep.subr.bf16.mxu0 0
        %1740 = vmatpush1.bf16.xpose.msra.mxu0 0
        %1741 = vmatprep.subr.bf16.mxu0 0
        %1742 = vmatpush1.bf16.xpose.msra.mxu0 0
        %1743 = vmatprep.subr.bf16.mxu0 0
        %1744 = vmatpush1.bf16.xpose.msra.mxu0 %v1727
        %1745 = vmatprep.subr.bf16.mxu0 0
        %1746 = vmatpush2.bf16.xpose.msra.mxu0 0
        %1747 = vmatprep.subr.bf16.mxu0 0
        %1748 = vmatpush2.bf16.xpose.msra.mxu0 0
        %1749 = vmatprep.subr.bf16.mxu0 0
        %1750 = vmatpush2.bf16.xpose.msra.mxu0 0
        %1751 = vmatprep.subr.bf16.mxu0 0
        %1752 = vmatpush2.bf16.xpose.msra.mxu0 0
        %1753 = vmatprep.subr.bf16.mxu0 0
        %1754 = vmatpush2.bf16.xpose.msra.mxu0 0
        %1755 = vmatprep.subr.bf16.mxu0 0
        %1756 = vmatpush2.bf16.xpose.msra.mxu0 0
        %1757 = vmatprep.subr.bf16.mxu0 0
        %1758 = vmatpush2.bf16.xpose.msra.mxu0 0
        %1759 = vmatprep.subr.bf16.mxu0 0
        %1760 = vmatpush2.bf16.xpose.msra.mxu0 0
        %1761 = vmatprep.mubr.bf16.mxu0 0
        %1762 = vmatmul.mubr.bf16.gmra.mxu0 %v1724
        %v1763 = vpop.f32.mrf.mxu0
        %v1764 = vadd.f32 0.0, %v1763
        %v1765 = vpop.f32.mrf.mxu0
        %v1766 = vpop.f32.mrf.mxu0
        %v1767 = vpop.f32.mrf.mxu0
        %1768 = vdwg.mxu0
        %v1770 = vsel %vm1630, %v1609, 0
        %v1773 = vsel %vm1630, %v1617, 0
        %1775 = vmatprep.subr.bf16.mxu0 0
        %1776 = vmatpush1.bf16.xpose.msra.mxu0 0
        %1777 = vmatprep.subr.bf16.mxu0 0
        %1778 = vmatpush1.bf16.xpose.msra.mxu0 0
        %1779 = vmatprep.subr.bf16.mxu0 0
        %1780 = vmatpush1.bf16.xpose.msra.mxu0 0
        %1781 = vmatprep.subr.bf16.mxu0 0
        %1782 = vmatpush1.bf16.xpose.msra.mxu0 0
        %1783 = vmatprep.subr.bf16.mxu0 0
        %1784 = vmatpush1.bf16.xpose.msra.mxu0 0
        %1785 = vmatprep.subr.bf16.mxu0 0
        %1786 = vmatpush1.bf16.xpose.msra.mxu0 0
        %1787 = vmatprep.subr.bf16.mxu0 0
        %1788 = vmatpush1.bf16.xpose.msra.mxu0 0
        %1789 = vmatprep.subr.bf16.mxu0 0
        %1790 = vmatpush1.bf16.xpose.msra.mxu0 %v1773
        %1791 = vmatprep.subr.bf16.mxu0 0
        %1792 = vmatpush2.bf16.xpose.msra.mxu0 0
        %1793 = vmatprep.subr.bf16.mxu0 0
        %1794 = vmatpush2.bf16.xpose.msra.mxu0 0
        %1795 = vmatprep.subr.bf16.mxu0 0
        %1796 = vmatpush2.bf16.xpose.msra.mxu0 0
        %1797 = vmatprep.subr.bf16.mxu0 0
        %1798 = vmatpush2.bf16.xpose.msra.mxu0 0
        %1799 = vmatprep.subr.bf16.mxu0 0
        %1800 = vmatpush2.bf16.xpose.msra.mxu0 0
        %1801 = vmatprep.subr.bf16.mxu0 0
        %1802 = vmatpush2.bf16.xpose.msra.mxu0 0
        %1803 = vmatprep.subr.bf16.mxu0 0
        %1804 = vmatpush2.bf16.xpose.msra.mxu0 0
        %1805 = vmatprep.subr.bf16.mxu0 0
        %1806 = vmatpush2.bf16.xpose.msra.mxu0 0
        %1807 = vmatprep.mubr.bf16.mxu0 0
        %1808 = vmatmul.mubr.bf16.gmra.mxu0 %v1770
        %v1809 = vpop.f32.mrf.mxu0
        %v1810 = vadd.f32 0.0, %v1809
        %v1811 = vpop.f32.mrf.mxu0
        %v1812 = vpop.f32.mrf.mxu0
        %v1813 = vpop.f32.mrf.mxu0
        %1814 = vdwg.mxu0
        %v1816 = vsel %vm1630, %v1610, 0
        %v1819 = vsel %vm1630, %v1618, 0
        %1821 = vmatprep.subr.bf16.mxu0 0
        %1822 = vmatpush1.bf16.xpose.msra.mxu0 0
        %1823 = vmatprep.subr.bf16.mxu0 0
        %1824 = vmatpush1.bf16.xpose.msra.mxu0 0
        %1825 = vmatprep.subr.bf16.mxu0 0
        %1826 = vmatpush1.bf16.xpose.msra.mxu0 0
        %1827 = vmatprep.subr.bf16.mxu0 0
        %1828 = vmatpush1.bf16.xpose.msra.mxu0 0
        %1829 = vmatprep.subr.bf16.mxu0 0
        %1830 = vmatpush1.bf16.xpose.msra.mxu0 0
        %1831 = vmatprep.subr.bf16.mxu0 0
        %1832 = vmatpush1.bf16.xpose.msra.mxu0 0
        %1833 = vmatprep.subr.bf16.mxu0 0
        %1834 = vmatpush1.bf16.xpose.msra.mxu0 0
        %1835 = vmatprep.subr.bf16.mxu0 0
        %1836 = vmatpush1.bf16.xpose.msra.mxu0 %v1819
        %1837 = vmatprep.subr.bf16.mxu0 0
        %1838 = vmatpush2.bf16.xpose.msra.mxu0 0
        %1839 = vmatprep.subr.bf16.mxu0 0
        %1840 = vmatpush2.bf16.xpose.msra.mxu0 0
        %1841 = vmatprep.subr.bf16.mxu0 0
        %1842 = vmatpush2.bf16.xpose.msra.mxu0 0
        %1843 = vmatprep.subr.bf16.mxu0 0
        %1844 = vmatpush2.bf16.xpose.msra.mxu0 0
        %1845 = vmatprep.subr.bf16.mxu0 0
        %1846 = vmatpush2.bf16.xpose.msra.mxu0 0
        %1847 = vmatprep.subr.bf16.mxu0 0
        %1848 = vmatpush2.bf16.xpose.msra.mxu0 0
        %1849 = vmatprep.subr.bf16.mxu0 0
        %1850 = vmatpush2.bf16.xpose.msra.mxu0 0
        %1851 = vmatprep.subr.bf16.mxu0 0
        %1852 = vmatpush2.bf16.xpose.msra.mxu0 0
        %1853 = vmatprep.mubr.bf16.mxu0 0
        %1854 = vmatmul.mubr.bf16.gmra.mxu0 %v1816
        %v1855 = vpop.f32.mrf.mxu0
        %v1856 = vadd.f32 0.0, %v1855
        %v1857 = vpop.f32.mrf.mxu0
        %v1858 = vpop.f32.mrf.mxu0
        %v1859 = vpop.f32.mrf.mxu0
        %1860 = vdwg.mxu0
        %v1862 = vsel %vm1630, %v1611, 0
        %v1865 = vsel %vm1630, %v1619, 0
        %1867 = vmatprep.subr.bf16.mxu0 0
        %1868 = vmatpush1.bf16.xpose.msra.mxu0 0
        %1869 = vmatprep.subr.bf16.mxu0 0
        %1870 = vmatpush1.bf16.xpose.msra.mxu0 0
        %1871 = vmatprep.subr.bf16.mxu0 0
        %1872 = vmatpush1.bf16.xpose.msra.mxu0 0
        %1873 = vmatprep.subr.bf16.mxu0 0
        %1874 = vmatpush1.bf16.xpose.msra.mxu0 0
        %1875 = vmatprep.subr.bf16.mxu0 0
        %1876 = vmatpush1.bf16.xpose.msra.mxu0 0
        %1877 = vmatprep.subr.bf16.mxu0 0
        %1878 = vmatpush1.bf16.xpose.msra.mxu0 0
        %1879 = vmatprep.subr.bf16.mxu0 0
        %1880 = vmatpush1.bf16.xpose.msra.mxu0 0
        %1881 = vmatprep.subr.bf16.mxu0 0
        %1882 = vmatpush1.bf16.xpose.msra.mxu0 %v1865
        %1883 = vmatprep.subr.bf16.mxu0 0
        %1884 = vmatpush2.bf16.xpose.msra.mxu0 0
        %1885 = vmatprep.subr.bf16.mxu0 0
        %1886 = vmatpush2.bf16.xpose.msra.mxu0 0
        %1887 = vmatprep.subr.bf16.mxu0 0
        %1888 = vmatpush2.bf16.xpose.msra.mxu0 0
        %1889 = vmatprep.subr.bf16.mxu0 0
        %1890 = vmatpush2.bf16.xpose.msra.mxu0 0
        %1891 = vmatprep.subr.bf16.mxu0 0
        %1892 = vmatpush2.bf16.xpose.msra.mxu0 0
        %1893 = vmatprep.subr.bf16.mxu0 0
        %1894 = vmatpush2.bf16.xpose.msra.mxu0 0
        %1895 = vmatprep.subr.bf16.mxu0 0
        %1896 = vmatpush2.bf16.xpose.msra.mxu0 0
        %1897 = vmatprep.subr.bf16.mxu0 0
        %1898 = vmatpush2.bf16.xpose.msra.mxu0 0
        %1899 = vmatprep.mubr.bf16.mxu0 0
        %1900 = vmatmul.mubr.bf16.gmra.mxu0 %v1862
        %v1901 = vpop.f32.mrf.mxu0
        %v1902 = vadd.f32 0.0, %v1901
        %v1903 = vpop.f32.mrf.mxu0
        %v1904 = vpop.f32.mrf.mxu0
        %v1905 = vpop.f32.mrf.mxu0
        %1906 = vdwg.mxu0
        %v1908 = vsel %vm1630, %v1612, 0
        %v1911 = vsel %vm1630, %v1620, 0
        %1913 = vmatprep.subr.bf16.mxu0 0
        %1914 = vmatpush1.bf16.xpose.msra.mxu0 0
        %1915 = vmatprep.subr.bf16.mxu0 0
        %1916 = vmatpush1.bf16.xpose.msra.mxu0 0
        %1917 = vmatprep.subr.bf16.mxu0 0
        %1918 = vmatpush1.bf16.xpose.msra.mxu0 0
        %1919 = vmatprep.subr.bf16.mxu0 0
        %1920 = vmatpush1.bf16.xpose.msra.mxu0 0
        %1921 = vmatprep.subr.bf16.mxu0 0
        %1922 = vmatpush1.bf16.xpose.msra.mxu0 0
        %1923 = vmatprep.subr.bf16.mxu0 0
        %1924 = vmatpush1.bf16.xpose.msra.mxu0 0
        %1925 = vmatprep.subr.bf16.mxu0 0
        %1926 = vmatpush1.bf16.xpose.msra.mxu0 0
        %1927 = vmatprep.subr.bf16.mxu0 0
        %1928 = vmatpush1.bf16.xpose.msra.mxu0 %v1911
        %1929 = vmatprep.subr.bf16.mxu0 0
        %1930 = vmatpush2.bf16.xpose.msra.mxu0 0
        %1931 = vmatprep.subr.bf16.mxu0 0
        %1932 = vmatpush2.bf16.xpose.msra.mxu0 0
        %1933 = vmatprep.subr.bf16.mxu0 0
        %1934 = vmatpush2.bf16.xpose.msra.mxu0 0
        %1935 = vmatprep.subr.bf16.mxu0 0
        %1936 = vmatpush2.bf16.xpose.msra.mxu0 0
        %1937 = vmatprep.subr.bf16.mxu0 0
        %1938 = vmatpush2.bf16.xpose.msra.mxu0 0
        %1939 = vmatprep.subr.bf16.mxu0 0
        %1940 = vmatpush2.bf16.xpose.msra.mxu0 0
        %1941 = vmatprep.subr.bf16.mxu0 0
        %1942 = vmatpush2.bf16.xpose.msra.mxu0 0
        %1943 = vmatprep.subr.bf16.mxu0 0
        %1944 = vmatpush2.bf16.xpose.msra.mxu0 0
        %1945 = vmatprep.mubr.bf16.mxu0 0
        %1946 = vmatmul.mubr.bf16.gmra.mxu0 %v1908
        %v1947 = vpop.f32.mrf.mxu0
        %v1948 = vadd.f32 0.0, %v1947
        %v1949 = vpop.f32.mrf.mxu0
        %v1950 = vpop.f32.mrf.mxu0
        %v1951 = vpop.f32.mrf.mxu0
        %1952 = vdwg.mxu0
        %v1954 = vsel %vm1630, %v1613, 0
        %v1957 = vsel %vm1630, %v1621, 0
        %1959 = vmatprep.subr.bf16.mxu0 0
        %1960 = vmatpush1.bf16.xpose.msra.mxu0 0
        %1961 = vmatprep.subr.bf16.mxu0 0
        %1962 = vmatpush1.bf16.xpose.msra.mxu0 0
        %1963 = vmatprep.subr.bf16.mxu0 0
        %1964 = vmatpush1.bf16.xpose.msra.mxu0 0
        %1965 = vmatprep.subr.bf16.mxu0 0
        %1966 = vmatpush1.bf16.xpose.msra.mxu0 0
        %1967 = vmatprep.subr.bf16.mxu0 0
        %1968 = vmatpush1.bf16.xpose.msra.mxu0 0
        %1969 = vmatprep.subr.bf16.mxu0 0
        %1970 = vmatpush1.bf16.xpose.msra.mxu0 0
        %1971 = vmatprep.subr.bf16.mxu0 0
        %1972 = vmatpush1.bf16.xpose.msra.mxu0 0
        %1973 = vmatprep.subr.bf16.mxu0 0
        %1974 = vmatpush1.bf16.xpose.msra.mxu0 %v1957
        %1975 = vmatprep.subr.bf16.mxu0 0
        %1976 = vmatpush2.bf16.xpose.msra.mxu0 0
        %1977 = vmatprep.subr.bf16.mxu0 0
        %1978 = vmatpush2.bf16.xpose.msra.mxu0 0
        %1979 = vmatprep.subr.bf16.mxu0 0
        %1980 = vmatpush2.bf16.xpose.msra.mxu0 0
        %1981 = vmatprep.subr.bf16.mxu0 0
        %1982 = vmatpush2.bf16.xpose.msra.mxu0 0
        %1983 = vmatprep.subr.bf16.mxu0 0
        %1984 = vmatpush2.bf16.xpose.msra.mxu0 0
        %1985 = vmatprep.subr.bf16.mxu0 0
        %1986 = vmatpush2.bf16.xpose.msra.mxu0 0
        %1987 = vmatprep.subr.bf16.mxu0 0
        %1988 = vmatpush2.bf16.xpose.msra.mxu0 0
        %1989 = vmatprep.subr.bf16.mxu0 0
        %1990 = vmatpush2.bf16.xpose.msra.mxu0 0
        %1991 = vmatprep.mubr.bf16.mxu0 0
        %1992 = vmatmul.mubr.bf16.gmra.mxu0 %v1954
        %v1993 = vpop.f32.mrf.mxu0
        %v1994 = vadd.f32 0.0, %v1993
        %v1995 = vpop.f32.mrf.mxu0
        %v1996 = vpop.f32.mrf.mxu0
        %v1997 = vpop.f32.mrf.mxu0
        %1998 = vdwg.mxu0
        %vm1999 = vcmask 64512
        %v2000 = vsel %vm1999, %v1672, -inf
        %2001 = vmax.xlane.f32.xlu0 %v2000
        %v2002 = vpop.xlane.xlu0 %2001
        %v2003 = vsel %vm1999, %v1718, -inf
        %2004 = vmax.xlane.f32.xlu0 %v2003
        %v2005 = vpop.xlane.xlu0 %2004
        %v2006 = vsel %vm1999, %v1764, -inf
        %2007 = vmax.xlane.f32.xlu0 %v2006
        %v2008 = vpop.xlane.xlu0 %2007
        %v2009 = vsel %vm1999, %v1810, -inf
        %2010 = vmax.xlane.f32.xlu0 %v2009
        %v2011 = vpop.xlane.xlu0 %2010
        %v2012 = vsel %vm1999, %v1856, -inf
        %2013 = vmax.xlane.f32.xlu0 %v2012
        %v2014 = vpop.xlane.xlu0 %2013
        %v2015 = vsel %vm1999, %v1902, -inf
        %2016 = vmax.xlane.f32.xlu0 %v2015
        %v2017 = vpop.xlane.xlu0 %2016
        %v2018 = vsel %vm1999, %v1948, -inf
        %2019 = vmax.xlane.f32.xlu0 %v2018
        %v2020 = vpop.xlane.xlu0 %2019
        %v2021 = vsel %vm1999, %v1994, -inf
        %2022 = vmax.xlane.f32.xlu0 %v2021
        %v2023 = vpop.xlane.xlu0 %2022
        %v2024 = vsub.f32 %v1672, %v2002
        %v2025 = vsub.f32 %v1718, %v2005
        %v2026 = vsub.f32 %v1764, %v2008
        %v2027 = vsub.f32 %v1810, %v2011
        %v2028 = vsub.f32 %v1856, %v2014
        %v2029 = vsub.f32 %v1902, %v2017
        %v2030 = vsub.f32 %v1948, %v2020
        %v2031 = vsub.f32 %v1994, %v2023
        %v2032 = vmul.f32 %v2024, 1.442695
        %v2033 = vpow.pop %v2032
        %v2034 = vmul.f32 %v2025, 1.442695
        %v2035 = vpow.pop %v2034
        %v2036 = vmul.f32 %v2026, 1.442695
        %v2037 = vpow.pop %v2036
        %v2038 = vmul.f32 %v2027, 1.442695
        %v2039 = vpow.pop %v2038
        %v2040 = vmul.f32 %v2028, 1.442695
        %v2041 = vpow.pop %v2040
        %v2042 = vmul.f32 %v2029, 1.442695
        %v2043 = vpow.pop %v2042
        %v2044 = vmul.f32 %v2030, 1.442695
        %v2045 = vpow.pop %v2044
        %v2046 = vmul.f32 %v2031, 1.442695
        %v2047 = vpow.pop %v2046
        %v2048 = vsel %vm1999, %v2033, 0.0
        %2049 = vadd.xlane.f32.xlu0 %v2048
        %v2050 = vpop.xlane.xlu0 %2049
        %v2051 = vsel %vm1999, %v2035, 0.0
        %2052 = vadd.xlane.f32.xlu0 %v2051
        %v2053 = vpop.xlane.xlu0 %2052
        %v2054 = vsel %vm1999, %v2037, 0.0
        %2055 = vadd.xlane.f32.xlu0 %v2054
        %v2056 = vpop.xlane.xlu0 %2055
        %v2057 = vsel %vm1999, %v2039, 0.0
        %2058 = vadd.xlane.f32.xlu0 %v2057
        %v2059 = vpop.xlane.xlu0 %2058
        %v2060 = vsel %vm1999, %v2041, 0.0
        %2061 = vadd.xlane.f32.xlu0 %v2060
        %v2062 = vpop.xlane.xlu0 %2061
        %v2063 = vsel %vm1999, %v2043, 0.0
        %2064 = vadd.xlane.f32.xlu0 %v2063
        %v2065 = vpop.xlane.xlu0 %2064
        %v2066 = vsel %vm1999, %v2045, 0.0
        %2067 = vadd.xlane.f32.xlu0 %v2066
        %v2068 = vpop.xlane.xlu0 %2067
        %v2069 = vsel %vm1999, %v2047, 0.0
        %2070 = vadd.xlane.f32.xlu0 %v2069
        %v2071 = vpop.xlane.xlu0 %2070
        %v2072 = vrcp.pop %v2050
        %v2073 = vrcp.pop %v2053
        %v2074 = vrcp.pop %v2056
        %v2075 = vrcp.pop %v2059
        %v2076 = vrcp.pop %v2062
        %v2077 = vrcp.pop %v2065
        %v2078 = vrcp.pop %v2068
        %v2079 = vrcp.pop %v2071
        %v2080 = vmul.f32 %v2033, %v2072
        %v2081 = vmul.f32 %v2035, %v2073
        %v2082 = vmul.f32 %v2037, %v2074
        %v2083 = vmul.f32 %v2039, %v2075
        %v2084 = vmul.f32 %v2041, %v2076
        %v2085 = vmul.f32 %v2043, %v2077
        %v2086 = vmul.f32 %v2045, %v2078
        %v2087 = vmul.f32 %v2047, %v2079
        %v2088 = vpack.c.bf16 %v2080, %v2080
        %v2089 = vpack.c.bf16 %v2081, %v2081
        %v2090 = vpack.c.bf16 %v2082, %v2082
        %v2091 = vpack.c.bf16 %v2083, %v2083
        %v2092 = vpack.c.bf16 %v2084, %v2084
        %v2093 = vpack.c.bf16 %v2085, %v2085
        %v2094 = vpack.c.bf16 %v2086, %v2086
        %v2095 = vpack.c.bf16 %v2087, %v2087
        %v2097 = vsel %vm1999, %v2088, 0
        %vm2099 = vcmask 1043456
        %v2101 = vsel %vm2099, %v1622, 0
        %2103 = vmatprep.subr.bf16.mxu0 0
        %2104 = vmatpush1.bf16.msra.mxu0 0
        %2105 = vmatprep.subr.bf16.mxu0 0
        %2106 = vmatpush1.bf16.msra.mxu0 0
        %2107 = vmatprep.subr.bf16.mxu0 0
        %2108 = vmatpush1.bf16.msra.mxu0 0
        %2109 = vmatprep.subr.bf16.mxu0 0
        %2110 = vmatpush1.bf16.msra.mxu0 0
        %2111 = vmatprep.subr.bf16.mxu0 0
        %2112 = vmatpush1.bf16.msra.mxu0 0
        %2113 = vmatprep.subr.bf16.mxu0 0
        %2114 = vmatpush1.bf16.msra.mxu0 0
        %2115 = vmatprep.subr.bf16.mxu0 0
        %2116 = vmatpush1.bf16.msra.mxu0 0
        %2117 = vmatprep.subr.bf16.mxu0 0
        %2118 = vmatpush1.bf16.msra.mxu0 %v2101
        %2119 = vmatprep.subr.bf16.mxu0 0
        %2120 = vmatpush2.bf16.msra.mxu0 0
        %2121 = vmatprep.subr.bf16.mxu0 0
        %2122 = vmatpush2.bf16.msra.mxu0 0
        %2123 = vmatprep.subr.bf16.mxu0 0
        %2124 = vmatpush2.bf16.msra.mxu0 0
        %2125 = vmatprep.subr.bf16.mxu0 0
        %2126 = vmatpush2.bf16.msra.mxu0 0
        %2127 = vmatprep.subr.bf16.mxu0 0
        %2128 = vmatpush2.bf16.msra.mxu0 0
        %2129 = vmatprep.subr.bf16.mxu0 0
        %2130 = vmatpush2.bf16.msra.mxu0 0
        %2131 = vmatprep.subr.bf16.mxu0 0
        %2132 = vmatpush2.bf16.msra.mxu0 0
        %2133 = vmatprep.subr.bf16.mxu0 0
        %2134 = vmatpush2.bf16.msra.mxu0 0
        %2135 = vmatprep.mubr.bf16.mxu0 0
        %2136 = vmatmul.mubr.bf16.gmra.mxu0 %v2097
        %v2137 = vpop.f32.mrf.mxu0
        %v2138 = vadd.f32 0.0, %v2137
        %v2139 = vpop.f32.mrf.mxu0
        %v2140 = vpop.f32.mrf.mxu0
        %v2141 = vpop.f32.mrf.mxu0
        %2142 = vdwg.mxu0
        %v2144 = vsel %vm1999, %v2089, 0
        %v2147 = vsel %vm2099, %v1623, 0
        %2149 = vmatprep.subr.bf16.mxu0 0
        %2150 = vmatpush1.bf16.msra.mxu0 0
        %2151 = vmatprep.subr.bf16.mxu0 0
        %2152 = vmatpush1.bf16.msra.mxu0 0
        %2153 = vmatprep.subr.bf16.mxu0 0
        %2154 = vmatpush1.bf16.msra.mxu0 0
        %2155 = vmatprep.subr.bf16.mxu0 0
        %2156 = vmatpush1.bf16.msra.mxu0 0
        %2157 = vmatprep.subr.bf16.mxu0 0
        %2158 = vmatpush1.bf16.msra.mxu0 0
        %2159 = vmatprep.subr.bf16.mxu0 0
        %2160 = vmatpush1.bf16.msra.mxu0 0
        %2161 = vmatprep.subr.bf16.mxu0 0
        %2162 = vmatpush1.bf16.msra.mxu0 0
        %2163 = vmatprep.subr.bf16.mxu0 0
        %2164 = vmatpush1.bf16.msra.mxu0 %v2147
        %2165 = vmatprep.subr.bf16.mxu0 0
        %2166 = vmatpush2.bf16.msra.mxu0 0
        %2167 = vmatprep.subr.bf16.mxu0 0
        %2168 = vmatpush2.bf16.msra.mxu0 0
        %2169 = vmatprep.subr.bf16.mxu0 0
        %2170 = vmatpush2.bf16.msra.mxu0 0
        %2171 = vmatprep.subr.bf16.mxu0 0
        %2172 = vmatpush2.bf16.msra.mxu0 0
        %2173 = vmatprep.subr.bf16.mxu0 0
        %2174 = vmatpush2.bf16.msra.mxu0 0
        %2175 = vmatprep.subr.bf16.mxu0 0
        %2176 = vmatpush2.bf16.msra.mxu0 0
        %2177 = vmatprep.subr.bf16.mxu0 0
        %2178 = vmatpush2.bf16.msra.mxu0 0
        %2179 = vmatprep.subr.bf16.mxu0 0
        %2180 = vmatpush2.bf16.msra.mxu0 0
        %2181 = vmatprep.mubr.bf16.mxu0 0
        %2182 = vmatmul.mubr.bf16.gmra.mxu0 %v2144
        %v2183 = vpop.f32.mrf.mxu0
        %v2184 = vadd.f32 0.0, %v2183
        %v2185 = vpop.f32.mrf.mxu0
        %v2186 = vpop.f32.mrf.mxu0
        %v2187 = vpop.f32.mrf.mxu0
        %2188 = vdwg.mxu0
        %v2190 = vsel %vm1999, %v2090, 0
        %v2193 = vsel %vm2099, %v1624, 0
        %2195 = vmatprep.subr.bf16.mxu0 0
        %2196 = vmatpush1.bf16.msra.mxu0 0
        %2197 = vmatprep.subr.bf16.mxu0 0
        %2198 = vmatpush1.bf16.msra.mxu0 0
        %2199 = vmatprep.subr.bf16.mxu0 0
        %2200 = vmatpush1.bf16.msra.mxu0 0
        %2201 = vmatprep.subr.bf16.mxu0 0
        %2202 = vmatpush1.bf16.msra.mxu0 0
        %2203 = vmatprep.subr.bf16.mxu0 0
        %2204 = vmatpush1.bf16.msra.mxu0 0
        %2205 = vmatprep.subr.bf16.mxu0 0
        %2206 = vmatpush1.bf16.msra.mxu0 0
        %2207 = vmatprep.subr.bf16.mxu0 0
        %2208 = vmatpush1.bf16.msra.mxu0 0
        %2209 = vmatprep.subr.bf16.mxu0 0
        %2210 = vmatpush1.bf16.msra.mxu0 %v2193
        %2211 = vmatprep.subr.bf16.mxu0 0
        %2212 = vmatpush2.bf16.msra.mxu0 0
        %2213 = vmatprep.subr.bf16.mxu0 0
        %2214 = vmatpush2.bf16.msra.mxu0 0
        %2215 = vmatprep.subr.bf16.mxu0 0
        %2216 = vmatpush2.bf16.msra.mxu0 0
        %2217 = vmatprep.subr.bf16.mxu0 0
        %2218 = vmatpush2.bf16.msra.mxu0 0
        %2219 = vmatprep.subr.bf16.mxu0 0
        %2220 = vmatpush2.bf16.msra.mxu0 0
        %2221 = vmatprep.subr.bf16.mxu0 0
        %2222 = vmatpush2.bf16.msra.mxu0 0
        %2223 = vmatprep.subr.bf16.mxu0 0
        %2224 = vmatpush2.bf16.msra.mxu0 0
        %2225 = vmatprep.subr.bf16.mxu0 0
        %2226 = vmatpush2.bf16.msra.mxu0 0
        %2227 = vmatprep.mubr.bf16.mxu0 0
        %2228 = vmatmul.mubr.bf16.gmra.mxu0 %v2190
        %v2229 = vpop.f32.mrf.mxu0
        %v2230 = vadd.f32 0.0, %v2229
        %v2231 = vpop.f32.mrf.mxu0
        %v2232 = vpop.f32.mrf.mxu0
        %v2233 = vpop.f32.mrf.mxu0
        %2234 = vdwg.mxu0
        %v2236 = vsel %vm1999, %v2091, 0
        %v2239 = vsel %vm2099, %v1625, 0
        %2241 = vmatprep.subr.bf16.mxu0 0
        %2242 = vmatpush1.bf16.msra.mxu0 0
        %2243 = vmatprep.subr.bf16.mxu0 0
        %2244 = vmatpush1.bf16.msra.mxu0 0
        %2245 = vmatprep.subr.bf16.mxu0 0
        %2246 = vmatpush1.bf16.msra.mxu0 0
        %2247 = vmatprep.subr.bf16.mxu0 0
        %2248 = vmatpush1.bf16.msra.mxu0 0
        %2249 = vmatprep.subr.bf16.mxu0 0
        %2250 = vmatpush1.bf16.msra.mxu0 0
        %2251 = vmatprep.subr.bf16.mxu0 0
        %2252 = vmatpush1.bf16.msra.mxu0 0
        %2253 = vmatprep.subr.bf16.mxu0 0
        %2254 = vmatpush1.bf16.msra.mxu0 0
        %2255 = vmatprep.subr.bf16.mxu0 0
        %2256 = vmatpush1.bf16.msra.mxu0 %v2239
        %2257 = vmatprep.subr.bf16.mxu0 0
        %2258 = vmatpush2.bf16.msra.mxu0 0
        %2259 = vmatprep.subr.bf16.mxu0 0
        %2260 = vmatpush2.bf16.msra.mxu0 0
        %2261 = vmatprep.subr.bf16.mxu0 0
        %2262 = vmatpush2.bf16.msra.mxu0 0
        %2263 = vmatprep.subr.bf16.mxu0 0
        %2264 = vmatpush2.bf16.msra.mxu0 0
        %2265 = vmatprep.subr.bf16.mxu0 0
        %2266 = vmatpush2.bf16.msra.mxu0 0
        %2267 = vmatprep.subr.bf16.mxu0 0
        %2268 = vmatpush2.bf16.msra.mxu0 0
        %2269 = vmatprep.subr.bf16.mxu0 0
        %2270 = vmatpush2.bf16.msra.mxu0 0
        %2271 = vmatprep.subr.bf16.mxu0 0
        %2272 = vmatpush2.bf16.msra.mxu0 0
        %2273 = vmatprep.mubr.bf16.mxu0 0
        %2274 = vmatmul.mubr.bf16.gmra.mxu0 %v2236
        %v2275 = vpop.f32.mrf.mxu0
        %v2276 = vadd.f32 0.0, %v2275
        %v2277 = vpop.f32.mrf.mxu0
        %v2278 = vpop.f32.mrf.mxu0
        %v2279 = vpop.f32.mrf.mxu0
        %2280 = vdwg.mxu0
        %v2282 = vsel %vm1999, %v2092, 0
        %v2285 = vsel %vm2099, %v1626, 0
        %2287 = vmatprep.subr.bf16.mxu0 0
        %2288 = vmatpush1.bf16.msra.mxu0 0
        %2289 = vmatprep.subr.bf16.mxu0 0
        %2290 = vmatpush1.bf16.msra.mxu0 0
        %2291 = vmatprep.subr.bf16.mxu0 0
        %2292 = vmatpush1.bf16.msra.mxu0 0
        %2293 = vmatprep.subr.bf16.mxu0 0
        %2294 = vmatpush1.bf16.msra.mxu0 0
        %2295 = vmatprep.subr.bf16.mxu0 0
        %2296 = vmatpush1.bf16.msra.mxu0 0
        %2297 = vmatprep.subr.bf16.mxu0 0
        %2298 = vmatpush1.bf16.msra.mxu0 0
        %2299 = vmatprep.subr.bf16.mxu0 0
        %2300 = vmatpush1.bf16.msra.mxu0 0
        %2301 = vmatprep.subr.bf16.mxu0 0
        %2302 = vmatpush1.bf16.msra.mxu0 %v2285
        %2303 = vmatprep.subr.bf16.mxu0 0
        %2304 = vmatpush2.bf16.msra.mxu0 0
        %2305 = vmatprep.subr.bf16.mxu0 0
        %2306 = vmatpush2.bf16.msra.mxu0 0
        %2307 = vmatprep.subr.bf16.mxu0 0
        %2308 = vmatpush2.bf16.msra.mxu0 0
        %2309 = vmatprep.subr.bf16.mxu0 0
        %2310 = vmatpush2.bf16.msra.mxu0 0
        %2311 = vmatprep.subr.bf16.mxu0 0
        %2312 = vmatpush2.bf16.msra.mxu0 0
        %2313 = vmatprep.subr.bf16.mxu0 0
        %2314 = vmatpush2.bf16.msra.mxu0 0
        %2315 = vmatprep.subr.bf16.mxu0 0
        %2316 = vmatpush2.bf16.msra.mxu0 0
        %2317 = vmatprep.subr.bf16.mxu0 0
        %2318 = vmatpush2.bf16.msra.mxu0 0
        %2319 = vmatprep.mubr.bf16.mxu0 0
        %2320 = vmatmul.mubr.bf16.gmra.mxu0 %v2282
        %v2321 = vpop.f32.mrf.mxu0
        %v2322 = vadd.f32 0.0, %v2321
        %v2323 = vpop.f32.mrf.mxu0
        %v2324 = vpop.f32.mrf.mxu0
        %v2325 = vpop.f32.mrf.mxu0
        %2326 = vdwg.mxu0
        %v2328 = vsel %vm1999, %v2093, 0
        %v2331 = vsel %vm2099, %v1627, 0
        %2333 = vmatprep.subr.bf16.mxu0 0
        %2334 = vmatpush1.bf16.msra.mxu0 0
        %2335 = vmatprep.subr.bf16.mxu0 0
        %2336 = vmatpush1.bf16.msra.mxu0 0
        %2337 = vmatprep.subr.bf16.mxu0 0
        %2338 = vmatpush1.bf16.msra.mxu0 0
        %2339 = vmatprep.subr.bf16.mxu0 0
        %2340 = vmatpush1.bf16.msra.mxu0 0
        %2341 = vmatprep.subr.bf16.mxu0 0
        %2342 = vmatpush1.bf16.msra.mxu0 0
        %2343 = vmatprep.subr.bf16.mxu0 0
        %2344 = vmatpush1.bf16.msra.mxu0 0
        %2345 = vmatprep.subr.bf16.mxu0 0
        %2346 = vmatpush1.bf16.msra.mxu0 0
        %2347 = vmatprep.subr.bf16.mxu0 0
        %2348 = vmatpush1.bf16.msra.mxu0 %v2331
        %2349 = vmatprep.subr.bf16.mxu0 0
        %2350 = vmatpush2.bf16.msra.mxu0 0
        %2351 = vmatprep.subr.bf16.mxu0 0
        %2352 = vmatpush2.bf16.msra.mxu0 0
        %2353 = vmatprep.subr.bf16.mxu0 0
        %2354 = vmatpush2.bf16.msra.mxu0 0
        %2355 = vmatprep.subr.bf16.mxu0 0
        %2356 = vmatpush2.bf16.msra.mxu0 0
        %2357 = vmatprep.subr.bf16.mxu0 0
        %2358 = vmatpush2.bf16.msra.mxu0 0
        %2359 = vmatprep.subr.bf16.mxu0 0
        %2360 = vmatpush2.bf16.msra.mxu0 0
        %2361 = vmatprep.subr.bf16.mxu0 0
        %2362 = vmatpush2.bf16.msra.mxu0 0
        %2363 = vmatprep.subr.bf16.mxu0 0
        %2364 = vmatpush2.bf16.msra.mxu0 0
        %2365 = vmatprep.mubr.bf16.mxu0 0
        %2366 = vmatmul.mubr.bf16.gmra.mxu0 %v2328
        %v2367 = vpop.f32.mrf.mxu0
        %v2368 = vadd.f32 0.0, %v2367
        %v2369 = vpop.f32.mrf.mxu0
        %v2370 = vpop.f32.mrf.mxu0
        %v2371 = vpop.f32.mrf.mxu0
        %2372 = vdwg.mxu0
        %v2374 = vsel %vm1999, %v2094, 0
        %v2377 = vsel %vm2099, %v1628, 0
        %2379 = vmatprep.subr.bf16.mxu0 0
        %2380 = vmatpush1.bf16.msra.mxu0 0
        %2381 = vmatprep.subr.bf16.mxu0 0
        %2382 = vmatpush1.bf16.msra.mxu0 0
        %2383 = vmatprep.subr.bf16.mxu0 0
        %2384 = vmatpush1.bf16.msra.mxu0 0
        %2385 = vmatprep.subr.bf16.mxu0 0
        %2386 = vmatpush1.bf16.msra.mxu0 0
        %2387 = vmatprep.subr.bf16.mxu0 0
        %2388 = vmatpush1.bf16.msra.mxu0 0
        %2389 = vmatprep.subr.bf16.mxu0 0
        %2390 = vmatpush1.bf16.msra.mxu0 0
        %2391 = vmatprep.subr.bf16.mxu0 0
        %2392 = vmatpush1.bf16.msra.mxu0 0
        %2393 = vmatprep.subr.bf16.mxu0 0
        %2394 = vmatpush1.bf16.msra.mxu0 %v2377
        %2395 = vmatprep.subr.bf16.mxu0 0
        %2396 = vmatpush2.bf16.msra.mxu0 0
        %2397 = vmatprep.subr.bf16.mxu0 0
        %2398 = vmatpush2.bf16.msra.mxu0 0
        %2399 = vmatprep.subr.bf16.mxu0 0
        %2400 = vmatpush2.bf16.msra.mxu0 0
        %2401 = vmatprep.subr.bf16.mxu0 0
        %2402 = vmatpush2.bf16.msra.mxu0 0
        %2403 = vmatprep.subr.bf16.mxu0 0
        %2404 = vmatpush2.bf16.msra.mxu0 0
        %2405 = vmatprep.subr.bf16.mxu0 0
        %2406 = vmatpush2.bf16.msra.mxu0 0
        %2407 = vmatprep.subr.bf16.mxu0 0
        %2408 = vmatpush2.bf16.msra.mxu0 0
        %2409 = vmatprep.subr.bf16.mxu0 0
        %2410 = vmatpush2.bf16.msra.mxu0 0
        %2411 = vmatprep.mubr.bf16.mxu0 0
        %2412 = vmatmul.mubr.bf16.gmra.mxu0 %v2374
        %v2413 = vpop.f32.mrf.mxu0
        %v2414 = vadd.f32 0.0, %v2413
        %v2415 = vpop.f32.mrf.mxu0
        %v2416 = vpop.f32.mrf.mxu0
        %v2417 = vpop.f32.mrf.mxu0
        %2418 = vdwg.mxu0
        %v2420 = vsel %vm1999, %v2095, 0
        %v2423 = vsel %vm2099, %v1629, 0
        %2425 = vmatprep.subr.bf16.mxu0 0
        %2426 = vmatpush1.bf16.msra.mxu0 0
        %2427 = vmatprep.subr.bf16.mxu0 0
        %2428 = vmatpush1.bf16.msra.mxu0 0
        %2429 = vmatprep.subr.bf16.mxu0 0
        %2430 = vmatpush1.bf16.msra.mxu0 0
        %2431 = vmatprep.subr.bf16.mxu0 0
        %2432 = vmatpush1.bf16.msra.mxu0 0
        %2433 = vmatprep.subr.bf16.mxu0 0
        %2434 = vmatpush1.bf16.msra.mxu0 0
        %2435 = vmatprep.subr.bf16.mxu0 0
        %2436 = vmatpush1.bf16.msra.mxu0 0
        %2437 = vmatprep.subr.bf16.mxu0 0
        %2438 = vmatpush1.bf16.msra.mxu0 0
        %2439 = vmatprep.subr.bf16.mxu0 0
        %2440 = vmatpush1.bf16.msra.mxu0 %v2423
        %2441 = vmatprep.subr.bf16.mxu0 0
        %2442 = vmatpush2.bf16.msra.mxu0 0
        %2443 = vmatprep.subr.bf16.mxu0 0
        %2444 = vmatpush2.bf16.msra.mxu0 0
        %2445 = vmatprep.subr.bf16.mxu0 0
        %2446 = vmatpush2.bf16.msra.mxu0 0
        %2447 = vmatprep.subr.bf16.mxu0 0
        %2448 = vmatpush2.bf16.msra.mxu0 0
        %2449 = vmatprep.subr.bf16.mxu0 0
        %2450 = vmatpush2.bf16.msra.mxu0 0
        %2451 = vmatprep.subr.bf16.mxu0 0
        %2452 = vmatpush2.bf16.msra.mxu0 0
        %2453 = vmatprep.subr.bf16.mxu0 0
        %2454 = vmatpush2.bf16.msra.mxu0 0
        %2455 = vmatprep.subr.bf16.mxu0 0
        %2456 = vmatpush2.bf16.msra.mxu0 0
        %2457 = vmatprep.mubr.bf16.mxu0 0
        %2458 = vmatmul.mubr.bf16.gmra.mxu0 %v2420
        %v2459 = vpop.f32.mrf.mxu0
        %v2460 = vadd.f32 0.0, %v2459
        %v2461 = vpop.f32.mrf.mxu0
        %v2462 = vpop.f32.mrf.mxu0
        %v2463 = vpop.f32.mrf.mxu0
        %2464 = vdwg.mxu0
        %v2465 = vpack.c.bf16 %v2138, %v2138
        %v2466 = vpack.c.bf16 %v2184, %v2184
        %v2467 = vpack.c.bf16 %v2230, %v2230
        %v2468 = vpack.c.bf16 %v2276, %v2276
        %v2469 = vpack.c.bf16 %v2322, %v2322
        %v2470 = vpack.c.bf16 %v2368, %v2368
        %v2471 = vpack.c.bf16 %v2414, %v2414
        %v2472 = vpack.c.bf16 %v2460, %v2460
        %v2473 = vld [vmem:[%s4] sm:$0x3]
        %v2474 = vld [vmem:[%s4 + $0x2] sm:$0x3]
        %v2475 = vld [vmem:[%s4 + $0x4] sm:$0x3]
        %v2476 = vld [vmem:[%s4 + $0x6] sm:$0x3]
        %v2477 = vld [vmem:[%s4 + $0x8] sm:$0x3]
        %v2478 = vld [vmem:[%s4 + $0xa] sm:$0x3]
        %v2479 = vld [vmem:[%s4 + $0xc] sm:$0x3]
        %v2480 = vld [vmem:[%s4 + $0xe] sm:$0x3]
        %v2482 = vsel %vm1630, %v2465, 0
        %vm2484 = vcmask 1041408
        %v2486 = vsel %vm2484, %v2473, 0
        %2488 = vmatprep.subr.bf16.mxu0 0
        %2489 = vmatpush1.bf16.msra.mxu0 0
        %2490 = vmatprep.subr.bf16.mxu0 0
        %2491 = vmatpush1.bf16.msra.mxu0 0
        %2492 = vmatprep.subr.bf16.mxu0 0
        %2493 = vmatpush1.bf16.msra.mxu0 0
        %2494 = vmatprep.subr.bf16.mxu0 0
        %2495 = vmatpush1.bf16.msra.mxu0 0
        %2496 = vmatprep.subr.bf16.mxu0 0
        %2497 = vmatpush1.bf16.msra.mxu0 0
        %2498 = vmatprep.subr.bf16.mxu0 0
        %2499 = vmatpush1.bf16.msra.mxu0 0
        %2500 = vmatprep.subr.bf16.mxu0 0
        %2501 = vmatpush1.bf16.msra.mxu0 0
        %2502 = vmatprep.subr.bf16.mxu0 0
        %2503 = vmatpush1.bf16.msra.mxu0 %v2486
        %2504 = vmatprep.subr.bf16.mxu0 0
        %2505 = vmatpush2.bf16.msra.mxu0 0
        %2506 = vmatprep.subr.bf16.mxu0 0
        %2507 = vmatpush2.bf16.msra.mxu0 0
        %2508 = vmatprep.subr.bf16.mxu0 0
        %2509 = vmatpush2.bf16.msra.mxu0 0
        %2510 = vmatprep.subr.bf16.mxu0 0
        %2511 = vmatpush2.bf16.msra.mxu0 0
        %2512 = vmatprep.subr.bf16.mxu0 0
        %2513 = vmatpush2.bf16.msra.mxu0 0
        %2514 = vmatprep.subr.bf16.mxu0 0
        %2515 = vmatpush2.bf16.msra.mxu0 0
        %2516 = vmatprep.subr.bf16.mxu0 0
        %2517 = vmatpush2.bf16.msra.mxu0 0
        %2518 = vmatprep.subr.bf16.mxu0 0
        %2519 = vmatpush2.bf16.msra.mxu0 0
        %2520 = vmatprep.mubr.bf16.mxu0 0
        %2521 = vmatmul.mubr.bf16.gmra.mxu0 %v2482
        %v2522 = vpop.f32.mrf.mxu0
        %v2523 = vadd.f32 0.0, %v2522
        %v2524 = vpop.f32.mrf.mxu0
        %v2525 = vpop.f32.mrf.mxu0
        %v2526 = vpop.f32.mrf.mxu0
        %2527 = vdwg.mxu0
        %v2529 = vsel %vm1630, %v2466, 0
        %v2532 = vsel %vm2484, %v2474, 0
        %2534 = vmatprep.subr.bf16.mxu0 0
        %2535 = vmatpush1.bf16.msra.mxu0 0
        %2536 = vmatprep.subr.bf16.mxu0 0
        %2537 = vmatpush1.bf16.msra.mxu0 0
        %2538 = vmatprep.subr.bf16.mxu0 0
        %2539 = vmatpush1.bf16.msra.mxu0 0
        %2540 = vmatprep.subr.bf16.mxu0 0
        %2541 = vmatpush1.bf16.msra.mxu0 0
        %2542 = vmatprep.subr.bf16.mxu0 0
        %2543 = vmatpush1.bf16.msra.mxu0 0
        %2544 = vmatprep.subr.bf16.mxu0 0
        %2545 = vmatpush1.bf16.msra.mxu0 0
        %2546 = vmatprep.subr.bf16.mxu0 0
        %2547 = vmatpush1.bf16.msra.mxu0 0
        %2548 = vmatprep.subr.bf16.mxu0 0
        %2549 = vmatpush1.bf16.msra.mxu0 %v2532
        %2550 = vmatprep.subr.bf16.mxu0 0
        %2551 = vmatpush2.bf16.msra.mxu0 0
        %2552 = vmatprep.subr.bf16.mxu0 0
        %2553 = vmatpush2.bf16.msra.mxu0 0
        %2554 = vmatprep.subr.bf16.mxu0 0
        %2555 = vmatpush2.bf16.msra.mxu0 0
        %2556 = vmatprep.subr.bf16.mxu0 0
        %2557 = vmatpush2.bf16.msra.mxu0 0
        %2558 = vmatprep.subr.bf16.mxu0 0
        %2559 = vmatpush2.bf16.msra.mxu0 0
        %2560 = vmatprep.subr.bf16.mxu0 0
        %2561 = vmatpush2.bf16.msra.mxu0 0
        %2562 = vmatprep.subr.bf16.mxu0 0
        %2563 = vmatpush2.bf16.msra.mxu0 0
        %2564 = vmatprep.subr.bf16.mxu0 0
        %2565 = vmatpush2.bf16.msra.mxu0 0
        %2566 = vmatprep.mubr.bf16.mxu0 0
        %2567 = vmatmul.mubr.bf16.gmra.mxu0 %v2529
        %v2568 = vpop.f32.mrf.mxu0
        %v2569 = vadd.f32 0.0, %v2568
        %v2570 = vpop.f32.mrf.mxu0
        %v2571 = vpop.f32.mrf.mxu0
        %v2572 = vpop.f32.mrf.mxu0
        %2573 = vdwg.mxu0
        %v2575 = vsel %vm1630, %v2467, 0
        %v2578 = vsel %vm2484, %v2475, 0
        %2580 = vmatprep.subr.bf16.mxu0 0
        %2581 = vmatpush1.bf16.msra.mxu0 0
        %2582 = vmatprep.subr.bf16.mxu0 0
        %2583 = vmatpush1.bf16.msra.mxu0 0
        %2584 = vmatprep.subr.bf16.mxu0 0
        %2585 = vmatpush1.bf16.msra.mxu0 0
        %2586 = vmatprep.subr.bf16.mxu0 0
        %2587 = vmatpush1.bf16.msra.mxu0 0
        %2588 = vmatprep.subr.bf16.mxu0 0
        %2589 = vmatpush1.bf16.msra.mxu0 0
        %2590 = vmatprep.subr.bf16.mxu0 0
        %2591 = vmatpush1.bf16.msra.mxu0 0
        %2592 = vmatprep.subr.bf16.mxu0 0
        %2593 = vmatpush1.bf16.msra.mxu0 0
        %2594 = vmatprep.subr.bf16.mxu0 0
        %2595 = vmatpush1.bf16.msra.mxu0 %v2578
        %2596 = vmatprep.subr.bf16.mxu0 0
        %2597 = vmatpush2.bf16.msra.mxu0 0
        %2598 = vmatprep.subr.bf16.mxu0 0
        %2599 = vmatpush2.bf16.msra.mxu0 0
        %2600 = vmatprep.subr.bf16.mxu0 0
        %2601 = vmatpush2.bf16.msra.mxu0 0
        %2602 = vmatprep.subr.bf16.mxu0 0
        %2603 = vmatpush2.bf16.msra.mxu0 0
        %2604 = vmatprep.subr.bf16.mxu0 0
        %2605 = vmatpush2.bf16.msra.mxu0 0
        %2606 = vmatprep.subr.bf16.mxu0 0
        %2607 = vmatpush2.bf16.msra.mxu0 0
        %2608 = vmatprep.subr.bf16.mxu0 0
        %2609 = vmatpush2.bf16.msra.mxu0 0
        %2610 = vmatprep.subr.bf16.mxu0 0
        %2611 = vmatpush2.bf16.msra.mxu0 0
        %2612 = vmatprep.mubr.bf16.mxu0 0
        %2613 = vmatmul.mubr.bf16.gmra.mxu0 %v2575
        %v2614 = vpop.f32.mrf.mxu0
        %v2615 = vadd.f32 0.0, %v2614
        %v2616 = vpop.f32.mrf.mxu0
        %v2617 = vpop.f32.mrf.mxu0
        %v2618 = vpop.f32.mrf.mxu0
        %2619 = vdwg.mxu0
        %v2621 = vsel %vm1630, %v2468, 0
        %v2624 = vsel %vm2484, %v2476, 0
        %2626 = vmatprep.subr.bf16.mxu0 0
        %2627 = vmatpush1.bf16.msra.mxu0 0
        %2628 = vmatprep.subr.bf16.mxu0 0
        %2629 = vmatpush1.bf16.msra.mxu0 0
        %2630 = vmatprep.subr.bf16.mxu0 0
        %2631 = vmatpush1.bf16.msra.mxu0 0
        %2632 = vmatprep.subr.bf16.mxu0 0
        %2633 = vmatpush1.bf16.msra.mxu0 0
        %2634 = vmatprep.subr.bf16.mxu0 0
        %2635 = vmatpush1.bf16.msra.mxu0 0
        %2636 = vmatprep.subr.bf16.mxu0 0
        %2637 = vmatpush1.bf16.msra.mxu0 0
        %2638 = vmatprep.subr.bf16.mxu0 0
        %2639 = vmatpush1.bf16.msra.mxu0 0
        %2640 = vmatprep.subr.bf16.mxu0 0
        %2641 = vmatpush1.bf16.msra.mxu0 %v2624
        %2642 = vmatprep.subr.bf16.mxu0 0
        %2643 = vmatpush2.bf16.msra.mxu0 0
        %2644 = vmatprep.subr.bf16.mxu0 0
        %2645 = vmatpush2.bf16.msra.mxu0 0
        %2646 = vmatprep.subr.bf16.mxu0 0
        %2647 = vmatpush2.bf16.msra.mxu0 0
        %2648 = vmatprep.subr.bf16.mxu0 0
        %2649 = vmatpush2.bf16.msra.mxu0 0
        %2650 = vmatprep.subr.bf16.mxu0 0
        %2651 = vmatpush2.bf16.msra.mxu0 0
        %2652 = vmatprep.subr.bf16.mxu0 0
        %2653 = vmatpush2.bf16.msra.mxu0 0
        %2654 = vmatprep.subr.bf16.mxu0 0
        %2655 = vmatpush2.bf16.msra.mxu0 0
        %2656 = vmatprep.subr.bf16.mxu0 0
        %2657 = vmatpush2.bf16.msra.mxu0 0
        %2658 = vmatprep.mubr.bf16.mxu0 0
        %2659 = vmatmul.mubr.bf16.gmra.mxu0 %v2621
        %v2660 = vpop.f32.mrf.mxu0
        %v2661 = vadd.f32 0.0, %v2660
        %v2662 = vpop.f32.mrf.mxu0
        %v2663 = vpop.f32.mrf.mxu0
        %v2664 = vpop.f32.mrf.mxu0
        %2665 = vdwg.mxu0
        %v2667 = vsel %vm1630, %v2469, 0
        %v2670 = vsel %vm2484, %v2477, 0
        %2672 = vmatprep.subr.bf16.mxu0 0
        %2673 = vmatpush1.bf16.msra.mxu0 0
        %2674 = vmatprep.subr.bf16.mxu0 0
        %2675 = vmatpush1.bf16.msra.mxu0 0
        %2676 = vmatprep.subr.bf16.mxu0 0
        %2677 = vmatpush1.bf16.msra.mxu0 0
        %2678 = vmatprep.subr.bf16.mxu0 0
        %2679 = vmatpush1.bf16.msra.mxu0 0
        %2680 = vmatprep.subr.bf16.mxu0 0
        %2681 = vmatpush1.bf16.msra.mxu0 0
        %2682 = vmatprep.subr.bf16.mxu0 0
        %2683 = vmatpush1.bf16.msra.mxu0 0
        %2684 = vmatprep.subr.bf16.mxu0 0
        %2685 = vmatpush1.bf16.msra.mxu0 0
        %2686 = vmatprep.subr.bf16.mxu0 0
        %2687 = vmatpush1.bf16.msra.mxu0 %v2670
        %2688 = vmatprep.subr.bf16.mxu0 0
        %2689 = vmatpush2.bf16.msra.mxu0 0
        %2690 = vmatprep.subr.bf16.mxu0 0
        %2691 = vmatpush2.bf16.msra.mxu0 0
        %2692 = vmatprep.subr.bf16.mxu0 0
        %2693 = vmatpush2.bf16.msra.mxu0 0
        %2694 = vmatprep.subr.bf16.mxu0 0
        %2695 = vmatpush2.bf16.msra.mxu0 0
        %2696 = vmatprep.subr.bf16.mxu0 0
        %2697 = vmatpush2.bf16.msra.mxu0 0
        %2698 = vmatprep.subr.bf16.mxu0 0
        %2699 = vmatpush2.bf16.msra.mxu0 0
        %2700 = vmatprep.subr.bf16.mxu0 0
        %2701 = vmatpush2.bf16.msra.mxu0 0
        %2702 = vmatprep.subr.bf16.mxu0 0
        %2703 = vmatpush2.bf16.msra.mxu0 0
        %2704 = vmatprep.mubr.bf16.mxu0 0
        %2705 = vmatmul.mubr.bf16.gmra.mxu0 %v2667
        %v2706 = vpop.f32.mrf.mxu0
        %v2707 = vadd.f32 0.0, %v2706
        %v2708 = vpop.f32.mrf.mxu0
        %v2709 = vpop.f32.mrf.mxu0
        %v2710 = vpop.f32.mrf.mxu0
        %2711 = vdwg.mxu0
        %v2713 = vsel %vm1630, %v2470, 0
        %v2716 = vsel %vm2484, %v2478, 0
        %2718 = vmatprep.subr.bf16.mxu0 0
        %2719 = vmatpush1.bf16.msra.mxu0 0
        %2720 = vmatprep.subr.bf16.mxu0 0
        %2721 = vmatpush1.bf16.msra.mxu0 0
        %2722 = vmatprep.subr.bf16.mxu0 0
        %2723 = vmatpush1.bf16.msra.mxu0 0
        %2724 = vmatprep.subr.bf16.mxu0 0
        %2725 = vmatpush1.bf16.msra.mxu0 0
        %2726 = vmatprep.subr.bf16.mxu0 0
        %2727 = vmatpush1.bf16.msra.mxu0 0
        %2728 = vmatprep.subr.bf16.mxu0 0
        %2729 = vmatpush1.bf16.msra.mxu0 0
        %2730 = vmatprep.subr.bf16.mxu0 0
        %2731 = vmatpush1.bf16.msra.mxu0 0
        %2732 = vmatprep.subr.bf16.mxu0 0
        %2733 = vmatpush1.bf16.msra.mxu0 %v2716
        %2734 = vmatprep.subr.bf16.mxu0 0
        %2735 = vmatpush2.bf16.msra.mxu0 0
        %2736 = vmatprep.subr.bf16.mxu0 0
        %2737 = vmatpush2.bf16.msra.mxu0 0
        %2738 = vmatprep.subr.bf16.mxu0 0
        %2739 = vmatpush2.bf16.msra.mxu0 0
        %2740 = vmatprep.subr.bf16.mxu0 0
        %2741 = vmatpush2.bf16.msra.mxu0 0
        %2742 = vmatprep.subr.bf16.mxu0 0
        %2743 = vmatpush2.bf16.msra.mxu0 0
        %2744 = vmatprep.subr.bf16.mxu0 0
        %2745 = vmatpush2.bf16.msra.mxu0 0
        %2746 = vmatprep.subr.bf16.mxu0 0
        %2747 = vmatpush2.bf16.msra.mxu0 0
        %2748 = vmatprep.subr.bf16.mxu0 0
        %2749 = vmatpush2.bf16.msra.mxu0 0
        %2750 = vmatprep.mubr.bf16.mxu0 0
        %2751 = vmatmul.mubr.bf16.gmra.mxu0 %v2713
        %v2752 = vpop.f32.mrf.mxu0
        %v2753 = vadd.f32 0.0, %v2752
        %v2754 = vpop.f32.mrf.mxu0
        %v2755 = vpop.f32.mrf.mxu0
        %v2756 = vpop.f32.mrf.mxu0
        %2757 = vdwg.mxu0
        %v2759 = vsel %vm1630, %v2471, 0
        %v2762 = vsel %vm2484, %v2479, 0
        %2764 = vmatprep.subr.bf16.mxu0 0
        %2765 = vmatpush1.bf16.msra.mxu0 0
        %2766 = vmatprep.subr.bf16.mxu0 0
        %2767 = vmatpush1.bf16.msra.mxu0 0
        %2768 = vmatprep.subr.bf16.mxu0 0
        %2769 = vmatpush1.bf16.msra.mxu0 0
        %2770 = vmatprep.subr.bf16.mxu0 0
        %2771 = vmatpush1.bf16.msra.mxu0 0
        %2772 = vmatprep.subr.bf16.mxu0 0
        %2773 = vmatpush1.bf16.msra.mxu0 0
        %2774 = vmatprep.subr.bf16.mxu0 0
        %2775 = vmatpush1.bf16.msra.mxu0 0
        %2776 = vmatprep.subr.bf16.mxu0 0
        %2777 = vmatpush1.bf16.msra.mxu0 0
        %2778 = vmatprep.subr.bf16.mxu0 0
        %2779 = vmatpush1.bf16.msra.mxu0 %v2762
        %2780 = vmatprep.subr.bf16.mxu0 0
        %2781 = vmatpush2.bf16.msra.mxu0 0
        %2782 = vmatprep.subr.bf16.mxu0 0
        %2783 = vmatpush2.bf16.msra.mxu0 0
        %2784 = vmatprep.subr.bf16.mxu0 0
        %2785 = vmatpush2.bf16.msra.mxu0 0
        %2786 = vmatprep.subr.bf16.mxu0 0
        %2787 = vmatpush2.bf16.msra.mxu0 0
        %2788 = vmatprep.subr.bf16.mxu0 0
        %2789 = vmatpush2.bf16.msra.mxu0 0
        %2790 = vmatprep.subr.bf16.mxu0 0
        %2791 = vmatpush2.bf16.msra.mxu0 0
        %2792 = vmatprep.subr.bf16.mxu0 0
        %2793 = vmatpush2.bf16.msra.mxu0 0
        %2794 = vmatprep.subr.bf16.mxu0 0
        %2795 = vmatpush2.bf16.msra.mxu0 0
        %2796 = vmatprep.mubr.bf16.mxu0 0
        %2797 = vmatmul.mubr.bf16.gmra.mxu0 %v2759
        %v2798 = vpop.f32.mrf.mxu0
        %v2799 = vadd.f32 0.0, %v2798
        %v2800 = vpop.f32.mrf.mxu0
        %v2801 = vpop.f32.mrf.mxu0
        %v2802 = vpop.f32.mrf.mxu0
        %2803 = vdwg.mxu0
        %v2805 = vsel %vm1630, %v2472, 0
        %v2808 = vsel %vm2484, %v2480, 0
        %2810 = vmatprep.subr.bf16.mxu0 0
        %2811 = vmatpush1.bf16.msra.mxu0 0
        %2812 = vmatprep.subr.bf16.mxu0 0
        %2813 = vmatpush1.bf16.msra.mxu0 0
        %2814 = vmatprep.subr.bf16.mxu0 0
        %2815 = vmatpush1.bf16.msra.mxu0 0
        %2816 = vmatprep.subr.bf16.mxu0 0
        %2817 = vmatpush1.bf16.msra.mxu0 0
        %2818 = vmatprep.subr.bf16.mxu0 0
        %2819 = vmatpush1.bf16.msra.mxu0 0
        %2820 = vmatprep.subr.bf16.mxu0 0
        %2821 = vmatpush1.bf16.msra.mxu0 0
        %2822 = vmatprep.subr.bf16.mxu0 0
        %2823 = vmatpush1.bf16.msra.mxu0 0
        %2824 = vmatprep.subr.bf16.mxu0 0
        %2825 = vmatpush1.bf16.msra.mxu0 %v2808
        %2826 = vmatprep.subr.bf16.mxu0 0
        %2827 = vmatpush2.bf16.msra.mxu0 0
        %2828 = vmatprep.subr.bf16.mxu0 0
        %2829 = vmatpush2.bf16.msra.mxu0 0
        %2830 = vmatprep.subr.bf16.mxu0 0
        %2831 = vmatpush2.bf16.msra.mxu0 0
        %2832 = vmatprep.subr.bf16.mxu0 0
        %2833 = vmatpush2.bf16.msra.mxu0 0
        %2834 = vmatprep.subr.bf16.mxu0 0
        %2835 = vmatpush2.bf16.msra.mxu0 0
        %2836 = vmatprep.subr.bf16.mxu0 0
        %2837 = vmatpush2.bf16.msra.mxu0 0
        %2838 = vmatprep.subr.bf16.mxu0 0
        %2839 = vmatpush2.bf16.msra.mxu0 0
        %2840 = vmatprep.subr.bf16.mxu0 0
        %2841 = vmatpush2.bf16.msra.mxu0 0
        %2842 = vmatprep.mubr.bf16.mxu0 0
        %2843 = vmatmul.mubr.bf16.gmra.mxu0 %v2805
        %v2844 = vpop.f32.mrf.mxu0
        %v2845 = vadd.f32 0.0, %v2844
        %v2846 = vpop.f32.mrf.mxu0
        %v2847 = vpop.f32.mrf.mxu0
        %v2848 = vpop.f32.mrf.mxu0
        %2849 = vdwg.mxu0
        %v2850 = vsel %vm294, %v2523, 0.0
        %v2851 = vsel %vm294, %v2569, 0.0
        %v2852 = vadd.f32 %v2850, %v2851
        %v2853 = vsel %vm294, %v2615, 0.0
        %v2854 = vadd.f32 %v2852, %v2853
        %v2855 = vsel %vm294, %v2661, 0.0
        %v2856 = vadd.f32 %v2854, %v2855
        %v2857 = vsel %vm294, %v2707, 0.0
        %v2858 = vadd.f32 %v2856, %v2857
        %v2859 = vsel %vm294, %v2753, 0.0
        %v2860 = vadd.f32 %v2858, %v2859
        %v2861 = vsel %vm294, %v2799, 0.0
        %v2862 = vadd.f32 %v2860, %v2861
        %v2863 = vsel %vm294, %v2845, 0.0
        %v2864 = vadd.f32 %v2862, %v2863
        %v2865 = vld [vmem:[%s5] sm:$0x1]
        %v2867 = vlaneseq
        %v2868 = vshrl.u32 %v2867, 7
        %v2869 = vsub.s32 0, %v2868
        %v2870 = vrot.slane %v2865, %v2869
        %v2872 = vadd.f32 %v2864, %v2870
        %2873 = vst.msk [vmem:[%s242] sm:$0xff] %vm294, %v2872
        %s2874 = sand.u32 %s159, 1
        %s2875 = scalar_lea.sflag [#allocation3], %s2874
        %s2876 = sand.u32 %s159, 1
        %s2877 = smul.addr %s2876, 8
        %s2878 = scalar_lea.vmem [#allocation2], %s2877
        // Predicated region
        $region45: #{tpu_custom_call.1} parent=43 // pred_check
          %p2879 = pneg %p169
        $region46: #{tpu_custom_call.1} parent=43 // pred_check_branch
          %2881 = sbr.rel (%p2879) target = $region48
        $region47: #{tpu_custom_call.1} parent=43 // pred_region
          %s2883 = ssub.s32 128, 128
          %2884 = vsyncadd %s2875, %s2883
          %s2885 = smul.addr %s20, 128
          %s2886 = scalar_lea.hbm %s6, %s2885
          %s2888 = sshll.u32 %s2878, 4
          %s2889 = int_to_ptr.vmem [resolvable:$true] %s2888
          %2891 = dma.vmem_to_hbm [thread:$0]  %s2889, 128, %s2886, %s2875
        $region48: #{tpu_custom_call.1} parent=43 // pred_fallthru
          _
      $region44: #{tpu_custom_call.1} parent=5 // pred_fallthru
        _
      %p2892 = scmp.le.s32.totalorder 2, %s15
      // Predicated region
      $region49: #{tpu_custom_call.1} parent=5 // pred_check
        %p2893 = pneg %p2892
      $region50: #{tpu_custom_call.1} parent=5 // pred_check_branch
        %2895 = sbr.rel (%p2893) target = $region52
      $region51: #{tpu_custom_call.1} parent=5 // pred_region
        %s2896 = ssub.s32 %s15, 2
        // Predicated region
        $region53: #{tpu_custom_call.1} parent=51 // pred_check
          %p2897 = pneg %p175
        $region54: #{tpu_custom_call.1} parent=51 // pred_check_branch
          %2899 = sbr.rel (%p2897) target = $region56
        $region55: #{tpu_custom_call.1} parent=51 // pred_region
          %s2900 = sand.u32 %s160, 1
          %s2901 = scalar_lea.sflag [#allocation3], %s2900
          %s2902 = sand.u32 %s160, 1
          %s2903 = smul.addr %s2902, 8
          %s2904 = scalar_lea.vmem [#allocation2], %s2903
          %2905 = dma.done %s2901, 128
        $region56: #{tpu_custom_call.1} parent=51 // pred_fallthru
          _
      $region52: #{tpu_custom_call.1} parent=5 // pred_fallthru
        _
    $region6: #{tpu_custom_call.1} parent=1 // loop_footer
      %s19 = sadd.s32 1, %s15
    $region7: #{tpu_custom_call.1} parent=1 // loop_footer_branch
      %14 = sbr.rel target = $region3
    $region8: #{tpu_custom_call.1} parent=1 // loop_exit
      _
    %2906 = vsyncpa [#allocation3], 1
    %s2907 = scalar_lea.sflag [#allocation3], 1
    %2908 = vsyncpa %s2907, 1

</llo_original>
